<compile_context>
chip_gen: v7x
topology: tpu7x:2x2x1
jax: 0.10.0
libtpu: 0.0.40
codegen_flags: <defaults>
</compile_context>

<pallas_src>
import functools
import math

import jax
import jax.numpy as jnp
from jax import lax
from jax.experimental import pallas as pl
from jax.experimental.pallas import tpu as pltpu

VMEM_LIMIT = 32 * 1024 * 1024  # scoped-VMEM request; safe on v5e / v6e / v7x

# Tile-size targets (tunable; raise toward 1024-2048 for production shapes).
ROW_TILE_TARGET = 512     # rows per block for the big linears
SPATIAL_TILE_TARGET = 256  # pixel/voxel tile for OCR gather / attention / integrate


def _pick_tile(n, target, align=8):
    """Largest divisor of n that is <= target and a multiple of `align` (fallback: n)."""
    if n <= target:
        return n
    t = target - (target % align)
    while t >= align:
        if n % t == 0:
            return t
        t -= align
    return n


# ----------------------------- Pallas kernels -----------------------------

def _linear_kernel(x_ref, w_ref, b_ref, o_ref, *, relu_cols, vpu_mix):
    w = w_ref[...]
    b = b_ref[...]
    if vpu_mix:
        # Tiny contraction dim (e.g. RGB): broadcast-FMA on the VPU, keep the MXU free.
        x = x_ref[...]
        y = x[:, 0:1] * w[0:1, :] + b
        for i in range(1, w.shape[0]):          # static python loop, Cin is tiny
            y = y + x[:, i:i + 1] * w[i:i + 1, :]
    else:
        y = jnp.dot(x_ref[...], w, preferred_element_type=jnp.float32) + b
    if relu_cols is not None:
        s, e = relu_cols
        if s <= 0 and e >= w.shape[1]:
            y = jnp.maximum(y, 0.0)
        else:
            col = lax.broadcasted_iota(jnp.int32, y.shape, 1)
            y = jnp.where((col >= s) & (col < e), jnp.maximum(y, 0.0), y)
    o_ref[...] = y


def linear_pallas(x, w, b, *, relu_cols=None, tm_target=ROW_TILE_TARGET):
    """x: (M, Cin), w: (Cin, Cout), b: (Cout,) -> (M, Cout).  Row-tiled 1x1 conv / linear."""
    M, Cin = x.shape
    Cout = w.shape[1]
    tm = _pick_tile(M, tm_target)
    kernel = functools.partial(_linear_kernel, relu_cols=relu_cols, vpu_mix=Cin <= 4)
    return pl.pallas_call(
        kernel,
        out_shape=jax.ShapeDtypeStruct((M, Cout), jnp.float32),
        grid=(M // tm,),
        in_specs=[pl.BlockSpec((tm, Cin), lambda i: (i, 0)),
                  pl.BlockSpec((Cin, Cout), lambda i: (0, 0)),
                  pl.BlockSpec((1, Cout), lambda i: (0, 0))],
        out_specs=pl.BlockSpec((tm, Cout), lambda i: (i, 0)),
        compiler_params=pltpu.CompilerParams(
            dimension_semantics=("parallel",), vmem_limit_bytes=VMEM_LIMIT),
    )(x, w, b.reshape(1, Cout))


def _mlp2_kernel(x_ref, w1_ref, b1_ref, w2_ref, b2_ref, o_ref):
    h = jnp.dot(x_ref[...], w1_ref[...], preferred_element_type=jnp.float32) + b1_ref[...]
    h = jnp.maximum(h, 0.0)
    o_ref[...] = jnp.dot(h, w2_ref[...], preferred_element_type=jnp.float32) + b2_ref[...]


def v2v_mlp(x, w1, b1, w2, b2, *, tm_target=ROW_TILE_TARGET):
    """Fused 2-layer 1x1x1-conv stub: relu(x@w1+b1)@w2+b2, row-tiled."""
    M, Cin = x.shape
    Cmid, Cout = w1.shape[1], w2.shape[1]
    tm = _pick_tile(M, tm_target)
    return pl.pallas_call(
        _mlp2_kernel,
        out_shape=jax.ShapeDtypeStruct((M, Cout), jnp.float32),
        grid=(M // tm,),
        in_specs=[pl.BlockSpec((tm, Cin), lambda i: (i, 0)),
                  pl.BlockSpec((Cin, Cmid), lambda i: (0, 0)),
                  pl.BlockSpec((1, Cmid), lambda i: (0, 0)),
                  pl.BlockSpec((Cmid, Cout), lambda i: (0, 0)),
                  pl.BlockSpec((1, Cout), lambda i: (0, 0))],
        out_specs=pl.BlockSpec((tm, Cout), lambda i: (i, 0)),
        compiler_params=pltpu.CompilerParams(
            dimension_semantics=("parallel",), vmem_limit_bytes=VMEM_LIMIT),
    )(x, w1, b1.reshape(1, Cmid), w2, b2.reshape(1, Cout))


def _ocr_gather_kernel(pk_ref, ctx_ref, m_sc, l_sc, *, cf, j):
    t = pl.program_id(1)

    @pl.when(t == 0)
    def _():
        m_sc[...] = jnp.full_like(m_sc, -1e30)
        l_sc[...] = jnp.zeros_like(l_sc)
        ctx_ref[...] = jnp.zeros_like(ctx_ref)

    blk = pk_ref[0]                          # (tp, Cpack)
    f = blk[:, :cf]                          # (tp, Cf)   features
    h = blk[:, cf:cf + j]                    # (tp, J)    soft-region logits
    m_old = m_sc[...]                        # (1, J)
    m_new = jnp.maximum(m_old, jnp.max(h, axis=0, keepdims=True))
    a = jnp.exp(m_old - m_new)               # (1, J) rescale of previous partials
    e = jnp.exp(h - m_new)                   # (tp, J)
    l_sc[...] = a * l_sc[...] + jnp.sum(e, axis=0, keepdims=True)
    upd = lax.dot_general(e, f, (((0,), (0,)), ((), ())),
                          preferred_element_type=jnp.float32)     # (J, Cf)
    ctx_ref[0] = jnp.transpose(a) * ctx_ref[0] + upd
    m_sc[...] = m_new

    @pl.when(t == pl.num_programs(1) - 1)
    def _():
        ctx_ref[0] = ctx_ref[0] / jnp.transpose(l_sc[...])


def ocr_gather(packed, *, cf, j, tp_target=SPATIAL_TILE_TARGET):
    """packed: (N, P, Cpack) channels-last with features in [:cf] and soft-region logits
    in [cf:cf+j].  Spatial-softmax gather (online softmax over P) -> context (N, j, cf)."""
    N, P, Cpack = packed.shape
    tp = _pick_tile(P, tp_target)
    return pl.pallas_call(
        functools.partial(_ocr_gather_kernel, cf=cf, j=j),
        out_shape=jax.ShapeDtypeStruct((N, j, cf), jnp.float32),
        grid=(N, P // tp),
        in_specs=[pl.BlockSpec((1, tp, Cpack), lambda n, t: (n, t, 0))],
        out_specs=pl.BlockSpec((1, j, cf), lambda n, t: (n, 0, 0)),
        scratch_shapes=[pltpu.VMEM((1, j), jnp.float32),
                        pltpu.VMEM((1, j), jnp.float32)],
        compiler_params=pltpu.CompilerParams(
            dimension_semantics=("parallel", "arbitrary"),
            vmem_limit_bytes=VMEM_LIMIT),
    )(packed)


def _ocr_attn_kernel(pk_ref, ctx_ref, wq_ref, wk_ref, wv_ref, wo_ref, out_ref, *, cf, scale):
    f = pk_ref[0, :, :cf]                                               # (tp, Cf)
    c = ctx_ref[0]                                                      # (K, Cf)
    q = jnp.dot(f, wq_ref[...], preferred_element_type=jnp.float32)     # (tp, Ck)
    k = jnp.dot(c, wk_ref[...], preferred_element_type=jnp.float32)     # (K, Ck)
    v = jnp.dot(c, wv_ref[...], preferred_element_type=jnp.float32)     # (K, Ck)
    sim = lax.dot_general(q, k, (((1,), (1,)), ((), ())),
                          preferred_element_type=jnp.float32) * scale   # (tp, K)
    sim = sim - jnp.max(sim, axis=-1, keepdims=True)
    p = jnp.exp(sim)
    p = p / jnp.sum(p, axis=-1, keepdims=True)
    obj = jnp.dot(p, v, preferred_element_type=jnp.float32)             # (tp, Ck)
    out = f + jnp.dot(obj, wo_ref[...], preferred_element_type=jnp.float32)
    out_ref[0] = jnp.maximum(out, 0.0)


def ocr_attn(packed, ctx, wq, wk, wv, wo, *, cf, tp_target=SPATIAL_TILE_TARGET):
    """OCR distribution head: object-context attention + residual fuse, queries tiled over P."""
    N, P, Cpack = packed.shape
    K = ctx.shape[1]
    Ck = wq.shape[1]
    tp = _pick_tile(P, tp_target)
    return pl.pallas_call(
        functools.partial(_ocr_attn_kernel, cf=cf, scale=1.0 / math.sqrt(Ck)),
        out_shape=jax.ShapeDtypeStruct((N, P, cf), jnp.float32),
        grid=(N, P // tp),
        in_specs=[pl.BlockSpec((1, tp, Cpack), lambda n, t: (n, t, 0)),
                  pl.BlockSpec((1, K, cf), lambda n, t: (n, 0, 0)),
                  pl.BlockSpec((cf, Ck), lambda n, t: (0, 0)),
                  pl.BlockSpec((cf, Ck), lambda n, t: (0, 0)),
                  pl.BlockSpec((cf, Ck), lambda n, t: (0, 0)),
                  pl.BlockSpec((Ck, cf), lambda n, t: (0, 0))],
        out_specs=pl.BlockSpec((1, tp, cf), lambda n, t: (n, t, 0)),
        compiler_params=pltpu.CompilerParams(
            dimension_semantics=("parallel", "parallel"),
            vmem_limit_bytes=VMEM_LIMIT),
    )(packed, ctx, wq, wk, wv, wo)


def _integrate_pass1_kernel(vol_ref, coord_ref, kp_ref, m_ref, l_ref, *, mult):
    t = pl.program_id(1)

    @pl.when(t == 0)
    def _():
        m_ref[...] = jnp.full_like(m_ref, -1e30)
        l_ref[...] = jnp.zeros_like(l_ref)
        kp_ref[...] = jnp.zeros_like(kp_ref)

    v = vol_ref[0] * mult                                   # (tnv, J)
    c = coord_ref[0]                                        # (tnv, 3)
    m_old = m_ref[0]                                        # (1, J)
    m_new = jnp.maximum(m_old, jnp.max(v, axis=0, keepdims=True))
    a = jnp.exp(m_old - m_new)
    e = jnp.exp(v - m_new)                                  # (tnv, J)
    l_ref[0] = a * l_ref[0] + jnp.sum(e, axis=0, keepdims=True)
    num = lax.dot_general(e, c, (((0,), (0,)), ((), ())),
                          preferred_element_type=jnp.float32)       # (J, 3)
    kp_ref[0] = jnp.transpose(a) * kp_ref[0] + num
    m_ref[0] = m_new

    @pl.when(t == pl.num_programs(1) - 1)
    def _():
        kp_ref[0] = kp_ref[0] / jnp.transpose(l_ref[0])


def _integrate_pass2_kernel(vol_ref, m_ref, l_ref, prob_ref, *, mult):
    v = vol_ref[0] * mult
    prob_ref[0] = jnp.exp(v - m_ref[0]) / l_ref[0]


def integrate_tensor_3d_with_coordinates(vol_logits, coords, *, multiplier=1.0,
                                         tnv_target=SPATIAL_TILE_TARGET):
    """vol_logits: (B, Nvox, J) channels-last, coords: (B, Nvox, 3).
    Returns (keypoints (B, J, 3), softmaxed volumes (B, Nvox, J)).
    Nvox-tiled online softmax: pass 1 = stats + coordinate expectation,
    pass 2 = normalized probability writeback.  volume_multiplier applied in-kernel."""
    B, Nvox, J = vol_logits.shape
    tnv = _pick_tile(Nvox, tnv_target)
    nt = Nvox // tnv
    kp, m, l = pl.pallas_call(
        functools.partial(_integrate_pass1_kernel, mult=multiplier),
        out_shape=(jax.ShapeDtypeStruct((B, J, 3), jnp.float32),
                   jax.ShapeDtypeStruct((B, 1, J), jnp.float32),
                   jax.ShapeDtypeStruct((B, 1, J), jnp.float32)),
        grid=(B, nt),
        in_specs=[pl.BlockSpec((1, tnv, J), lambda b, t: (b, t, 0)),
                  pl.BlockSpec((1, tnv, 3), lambda b, t: (b, t, 0))],
        out_specs=(pl.BlockSpec((1, J, 3), lambda b, t: (b, 0, 0)),
                   pl.BlockSpec((1, 1, J), lambda b, t: (b, 0, 0)),
                   pl.BlockSpec((1, 1, J), lambda b, t: (b, 0, 0))),
        compiler_params=pltpu.CompilerParams(
            dimension_semantics=("parallel", "arbitrary"),
            vmem_limit_bytes=VMEM_LIMIT),
    )(vol_logits, coords)
    soft = pl.pallas_call(
        functools.partial(_integrate_pass2_kernel, mult=multiplier),
        out_shape=jax.ShapeDtypeStruct((B, Nvox, J), jnp.float32),
        grid=(B, nt),
        in_specs=[pl.BlockSpec((1, tnv, J), lambda b, t: (b, t, 0)),
                  pl.BlockSpec((1, 1, J), lambda b, t: (b, 0, 0)),
                  pl.BlockSpec((1, 1, J), lambda b, t: (b, 0, 0))],
        out_specs=pl.BlockSpec((1, tnv, J), lambda b, t: (b, t, 0)),
        compiler_params=pltpu.CompilerParams(
            dimension_semantics=("parallel", "parallel"),
            vmem_limit_bytes=VMEM_LIMIT),
    )(vol_logits, m, l)
    return kp, soft


# ----------------------------- plain-JAX glue -----------------------------

def make_coord_volumes(base_points, cuboid_side, volume_size):
    """Eval-mode (theta = 0 -> identity rotation) coordinate volumes, (B, V, V, V, 3)."""
    g = jnp.arange(volume_size, dtype=jnp.float32)
    xxx, yyy, zzz = jnp.meshgrid(g, g, g, indexing="ij")
    grid = jnp.stack([xxx, yyy, zzz], axis=-1)                 # (V, V, V, 3)
    step = cuboid_side / (volume_size - 1)
    position = base_points - cuboid_side / 2.0                 # (B, 3)
    return position[:, None, None, None, :] + step * grid[None]


def _bilinear_sample_hwc(feat, x, y):
    """feat: (H, W, C), x/y: (Nvox,) pixel coords -> (Nvox, C), zero padding outside."""
    H, W, _ = feat.shape
    x0 = jnp.floor(x)
    y0 = jnp.floor(y)
    x1 = x0 + 1.0
    y1 = y0 + 1.0
    wx1 = x - x0
    wx0 = 1.0 - wx1
    wy1 = y - y0
    wy0 = 1.0 - wy1

    def gather(xi, yi):
        valid = ((xi >= 0) & (xi <= W - 1) & (yi >= 0) & (yi <= H - 1)).astype(feat.dtype)
        xi_c = jnp.clip(xi, 0, W - 1).astype(jnp.int32)
        yi_c = jnp.clip(yi, 0, H - 1).astype(jnp.int32)
        return feat[yi_c, xi_c, :] * valid[:, None]

    return (gather(x0, y0) * (wx0 * wy0)[:, None] + gather(x1, y0) * (wx1 * wy0)[:, None]
            + gather(x0, y1) * (wx0 * wy1)[:, None] + gather(x1, y1) * (wx1 * wy1)[:, None])


def unproject_heatmaps_hwc(feat_hwc, proj, coord_volumes):
    """feat_hwc: (B, V, H, W, C), proj: (B, V, 3, 4), coord_volumes: (B, Vs, Vs, Vs, 3).
    'sum' aggregation over views; returns channels-last volumes (B, Nvox, C)."""
    # TODO(synk): data-dependent bilinear gather (grid_sample) kept in plain JAX;
    # no clean rectangular-BlockSpec Pallas equivalent for this gather.
    B = feat_hwc.shape[0]
    nvox = coord_volumes.shape[1] ** 3
    coords = coord_volumes.reshape(B, nvox, 3)
    homog = jnp.concatenate([coords, jnp.ones((B, nvox, 1), coords.dtype)], axis=-1)

    def sample_one_view(feat_v, proj_v, homog_b):
        p2d = homog_b @ proj_v.T                               # (Nvox, 3)
        z = p2d[:, 2]
        # sign-preserving clamp (avoids flipping coords for near-plane points)
        z = jnp.where(z >= 0.0, jnp.maximum(z, 1e-6), jnp.minimum(z, -1e-6))
        return _bilinear_sample_hwc(feat_v, p2d[:, 0] / z, p2d[:, 1] / z)

    def per_batch(feat_b, proj_b, homog_b):
        sampled = jax.vmap(sample_one_view, in_axes=(0, 0, None))(feat_b, proj_b, homog_b)
        return jnp.sum(sampled, axis=0)                        # 'sum' aggregation

    return jax.vmap(per_batch)(feat_hwc, proj, homog)          # (B, Nvox, C)


# ----------------------------- parameters -----------------------------

def _uniform(key, shape, fan_in):
    y = 1.0 / math.sqrt(fan_in)
    return jax.random.uniform(key, shape, jnp.float32, -y, y)


def init_params(key, num_joints, feat_channels=256, feat3d_channels=32, joints_pad=32):
    J, Jp, Cf, C3 = num_joints, joints_pad, feat_channels, feat3d_channels
    ks = jax.random.split(key, 14)
    p = {}
    # backbone stub: fused 1x1 conv image -> [features(Cf) | heat logits(J, lane-padded to Jp)]
    # TODO(synk): full pose_resnet backbone replaced by a deterministic 1x1-conv stub.
    w_feat = _uniform(ks[0], (3, Cf), 3)
    w_heat = _uniform(ks[1], (3, J), 3)
    p["bb_w"] = jnp.concatenate([w_feat, w_heat, jnp.zeros((3, Jp - J), jnp.float32)], axis=1)
    p["bb_b"] = jnp.zeros((Cf + Jp,), jnp.float32)
    # OCR 2D (last_inp = mid = key = 256)
    p["ocr2d_wq"] = _uniform(ks[2], (Cf, Cf), Cf)
    p["ocr2d_wk"] = _uniform(ks[3], (Cf, Cf), Cf)
    p["ocr2d_wv"] = _uniform(ks[4], (Cf, Cf), Cf)
    p["ocr2d_wo"] = _uniform(ks[5], (Cf, Cf), Cf)
    # process_features: Conv2d(256, 32, 1)
    p["pf_w"] = _uniform(ks[6], (Cf, C3), Cf)
    p["pf_b"] = jnp.zeros((C3,), jnp.float32)
    # OCR 3D protocol 1 (last_inp = mid = key = 32)
    p["ocr3d_wq"] = _uniform(ks[7], (C3, C3), C3)
    p["ocr3d_wk"] = _uniform(ks[8], (C3, C3), C3)
    p["ocr3d_wv"] = _uniform(ks[9], (C3, C3), C3)
    p["ocr3d_wo"] = _uniform(ks[10], (C3, C3), C3)
    # V2V stub (32 -> 32 -> J, output lane-padded to Jp), fused 2-layer MLP
    # TODO(synk): full V2VModel 3D conv encoder-decoder replaced by a 1x1x1-conv stub.
    p["v2v_w1"] = _uniform(ks[11], (C3, C3), C3)
    p["v2v_b1"] = jnp.zeros((C3,), jnp.float32)
    w2 = _uniform(ks[12], (C3, J), C3)
    p["v2v_w2"] = jnp.concatenate([w2, jnp.zeros((C3, Jp - J), jnp.float32)], axis=1)
    p["v2v_b2"] = jnp.zeros((Jp,), jnp.float32)
    return p


# ----------------------------- forward pass -----------------------------

def forward(images, proj_matricies, batch, params, cfg):
    """Mirrors VolumetricTriangulationNet_TR_TR.forward (eval mode, 'sum' aggregation)."""
    B, nviews = images.shape[:2]
    C_img, H, W = images.shape[2:]
    N = B * nviews
    P = H * W
    J = cfg["num_joints"]
    Jp = 32                       # lane-padded heat/joint channel count
    Cf = 256
    C3 = 32
    Vs = cfg["volume_size"]
    Nvox = Vs ** 3

    imgs = images.reshape(N, C_img, H, W)
    x = jnp.transpose(imgs, (0, 2, 3, 1)).reshape(N * P, C_img)     # channels-last pixels

    # --- backbone stub: fused heads -> [relu(features 256) | heat logits 17 (pad 32)] ---
    y = linear_pallas(x, params["bb_w"], params["bb_b"], relu_cols=(0, Cf))   # (N*P, 288)
    packed2d = y.reshape(N, P, Cf + Jp)

    # --- OCR 2D transformer --------------------------------------------------------------
    # TODO(synk): OCR_2D_Module source not provided; implements standard OCR gather +
    # object-context attention + residual fuse with the declared channel sizes.
    ctx2d = ocr_gather(packed2d, cf=Cf, j=J)                                  # (N, J, 256)
    feats = ocr_attn(packed2d, ctx2d, params["ocr2d_wq"], params["ocr2d_wk"],
                     params["ocr2d_wv"], params["ocr2d_wo"], cf=Cf)           # (N, P, 256)

    # --- process_features: Conv2d(256, 32, 1) ---------------------------------------------
    feats32 = linear_pallas(feats.reshape(N * P, Cf), params["pf_w"], params["pf_b"])
    feats32_hwc = feats32.reshape(N, H, W, C3)
    features_out = jnp.transpose(feats32_hwc, (0, 3, 1, 2)).reshape(B, nviews, C3, H, W)

    heat_hwc = y[:, Cf:Cf + J].reshape(N, H, W, J)                            # real joints only

    # --- coord volumes (kind='mpii', eval mode => theta = 0) ------------------------------
    base_points = batch["pred_keypoints_3d"][:, 6, :3]
    coord_volumes = make_coord_volumes(base_points, cfg["cuboid_side"], Vs)

    # --- fused unprojection of [features32 | heat17] ('sum' aggregation over views) -------
    packed_hwc = jnp.concatenate([feats32_hwc, heat_hwc], axis=-1)
    packed_hwc = packed_hwc.reshape(B, nviews, H, W, C3 + J)
    vol_packed = unproject_heatmaps_hwc(packed_hwc, proj_matricies, coord_volumes)  # (B, Nvox, 49)

    # --- OCR 3D transformer (protocol 1) ---------------------------------------------------
    ctx3d = ocr_gather(vol_packed, cf=C3, j=J)                                # (B, J, 32)
    vf = ocr_attn(vol_packed, ctx3d, params["ocr3d_wq"], params["ocr3d_wk"],
                  params["ocr3d_wv"], params["ocr3d_wo"], cf=C3)              # (B, Nvox, 32)

    # --- volume net (V2V stub, fused 2-layer MLP, joints lane-padded) ----------------------
    vol_logits = v2v_mlp(vf.reshape(B * Nvox, C3), params["v2v_w1"], params["v2v_b1"],
                         params["v2v_w2"], params["v2v_b2"])                  # (B*Nvox, 32)
    vol_logits = vol_logits.reshape(B, Nvox, Jp)[:, :, :J]                    # (B, Nvox, J)

    # --- softmax-integrate with coordinates (volume_multiplier applied in-kernel) ----------
    coords_flat = coord_volumes.reshape(B, Nvox, 3)
    kp_pred, soft_vols = integrate_tensor_3d_with_coordinates(
        vol_logits, coords_flat, multiplier=cfg["volume_multiplier"])
    volumes_out = jnp.transpose(soft_vols.reshape(B, Vs, Vs, Vs, J), (0, 4, 1, 2, 3))

    cuboids = [(base_points[b] - cfg["cuboid_side"] / 2.0, cfg["cuboid_side"])
               for b in range(B)]
    vol_confidences = None
    return (kp_pred, features_out, volumes_out, vol_confidences,
            cuboids, coord_volumes, base_points)


# ----------------------------- main -----------------------------

if __name__ == "__main__":
    cfg = dict(num_joints=17, volume_size=8, cuboid_side=250.0, volume_multiplier=1.0)

    key = jax.random.PRNGKey(0)
    k_img, k_kp, k_par = jax.random.split(key, 3)

    B, nviews, H, W = 2, 2, 16, 16
    images = jax.random.normal(k_img, (B, nviews, 3, H, W), jnp.float32)

    # deterministic pseudo "predicted" 3D keypoints (pelvis index 6 used as base point)
    pred_keypoints_3d = jax.random.normal(k_kp, (B, 17, 3), jnp.float32) * 10.0
    batch = {"pred_keypoints_3d": pred_keypoints_3d}

    # deterministic orthographic-like projection matrices, (B, nviews, 3, 4)
    s = (H - 1) / cfg["cuboid_side"]
    projs = []
    for v in range(nviews):
        projs.append(jnp.array([[s, 0.0, 0.0, (W - 1) / 2.0 + 0.25 * v],
                                [0.0, s, 0.0, (H - 1) / 2.0 - 0.25 * v],
                                [0.0, 0.0, 0.0, 1.0]], jnp.float32))
    proj_matricies = jnp.broadcast_to(jnp.stack(projs, 0)[None], (B, nviews, 3, 4))

    params = init_params(k_par, cfg["num_joints"])

    outs = forward(images, proj_matricies, batch, params, cfg)
    kp_pred, features_out, volumes_out, vol_conf, cuboids, coord_volumes, base_points = outs
    jax.block_until_ready((kp_pred, features_out, volumes_out))

    assert kp_pred.shape == (B, cfg["num_joints"], 3)
    assert features_out.shape == (B, nviews, 32, H, W)
    assert volumes_out.shape == (B, cfg["num_joints"], 8, 8, 8)
    assert bool(jnp.all(jnp.isfinite(kp_pred)))
    print("KERNEL_OK")
</pallas_src>

<mosaic_0001>
module attributes {stable_mosaic.version = 11 : i64} {
  func.func @_linear_kernel(%arg0: i32, %arg1: memref<512x3xf32, #tpu.memory_space<vmem>>, %arg2: memref<3x288xf32, #tpu.memory_space<vmem>>, %arg3: memref<1x288xf32, #tpu.memory_space<vmem>>, %arg4: memref<512x288xf32, #tpu.memory_space<vmem>>) attributes {dimension_semantics = [#tpu.dimension_semantics<parallel>], iteration_bounds = array<i64: 2>, scalar_prefetch = 0 : i64, scratch_operands = 0 : i64, tpu.core_type = #tpu.core_type<tc>, window_params = [{transform_indices = @transform_0, window_bounds = array<i64: 512, 3>}, {pipeline_mode = #tpu.pipeline_mode<synchronous>, transform_indices = @transform_1, window_bounds = array<i64: 3, 288>}, {pipeline_mode = #tpu.pipeline_mode<synchronous>, transform_indices = @transform_2, window_bounds = array<i64: 1, 288>}, {transform_indices = @transform_3, window_bounds = array<i64: 512, 288>}]} {
    %c0 = arith.constant 0 : index
    %c0_0 = arith.constant 0 : index
    %0 = vector.load %arg2[%c0, %c0_0] : memref<3x288xf32, #tpu.memory_space<vmem>>, vector<3x288xf32>
    %c0_1 = arith.constant 0 : index
    %c0_2 = arith.constant 0 : index
    %1 = vector.load %arg3[%c0_1, %c0_2] : memref<1x288xf32, #tpu.memory_space<vmem>>, vector<1x288xf32>
    %c0_3 = arith.constant 0 : index
    %c0_4 = arith.constant 0 : index
    %2 = vector.load %arg1[%c0_3, %c0_4] : memref<512x3xf32, #tpu.memory_space<vmem>>, vector<512x3xf32>
    %3 = vector.extract_strided_slice %2 {offsets = [0, 0], sizes = [512, 1], strides = [1, 1]} : vector<512x3xf32> to vector<512x1xf32>
    %4 = vector.extract_strided_slice %0 {offsets = [0, 0], sizes = [1, 288], strides = [1, 1]} : vector<3x288xf32> to vector<1x288xf32>
    %5 = vector.broadcast %3 : vector<512x1xf32> to vector<512x288xf32>
    %6 = vector.broadcast %4 : vector<1x288xf32> to vector<512x288xf32>
    %7 = arith.mulf %5, %6 : vector<512x288xf32>
    %8 = vector.broadcast %1 : vector<1x288xf32> to vector<512x288xf32>
    %9 = arith.addf %7, %8 : vector<512x288xf32>
    %10 = vector.extract_strided_slice %2 {offsets = [0, 1], sizes = [512, 1], strides = [1, 1]} : vector<512x3xf32> to vector<512x1xf32>
    %11 = vector.extract_strided_slice %0 {offsets = [1, 0], sizes = [1, 288], strides = [1, 1]} : vector<3x288xf32> to vector<1x288xf32>
    %12 = vector.broadcast %10 : vector<512x1xf32> to vector<512x288xf32>
    %13 = vector.broadcast %11 : vector<1x288xf32> to vector<512x288xf32>
    %14 = arith.mulf %12, %13 : vector<512x288xf32>
    %15 = arith.addf %9, %14 : vector<512x288xf32>
    %16 = vector.extract_strided_slice %2 {offsets = [0, 2], sizes = [512, 1], strides = [1, 1]} : vector<512x3xf32> to vector<512x1xf32>
    %17 = vector.extract_strided_slice %0 {offsets = [2, 0], sizes = [1, 288], strides = [1, 1]} : vector<3x288xf32> to vector<1x288xf32>
    %18 = vector.broadcast %16 : vector<512x1xf32> to vector<512x288xf32>
    %19 = vector.broadcast %17 : vector<1x288xf32> to vector<512x288xf32>
    %20 = arith.mulf %18, %19 : vector<512x288xf32>
    %21 = arith.addf %15, %20 : vector<512x288xf32>
    %22 = tpu.iota {dimensions = array<i32: 1>} : vector<512x288xi32>
    %c0_i32 = arith.constant 0 : i32
    %23 = vector.broadcast %c0_i32 : i32 to vector<512x288xi32>
    %24 = arith.cmpi sge, %22, %23 : vector<512x288xi32>
    %c256_i32 = arith.constant 256 : i32
    %25 = vector.broadcast %c256_i32 : i32 to vector<512x288xi32>
    %26 = arith.cmpi slt, %22, %25 : vector<512x288xi32>
    %27 = arith.andi %24, %26 : vector<512x288xi1>
    %cst = arith.constant 0.000000e+00 : f32
    %28 = vector.broadcast %cst : f32 to vector<512x288xf32>
    %29 = arith.maximumf %21, %28 : vector<512x288xf32>
    %30 = arith.select %27, %29, %21 : vector<512x288xi1>, vector<512x288xf32>
    %c0_5 = arith.constant 0 : index
    %c0_6 = arith.constant 0 : index
    %31 = vector.load %arg4[%c0_5, %c0_6] : memref<512x288xf32, #tpu.memory_space<vmem>>, vector<512x288xf32>
    tpu.vector_store %arg4[%c0_5, %c0_6], %30 {strides = array<i32>} : memref<512x288xf32, #tpu.memory_space<vmem>>, vector<512x288xf32>,
    return
  }
  func.func @transform_0(%arg0: i32) -> (i32, i32) {
    %c0_i32 = arith.constant 0 : i32
    %c0_i32_0 = arith.constant 0 : i32
    return %arg0, %c0_i32 : i32, i32
  }
  func.func @transform_1(%arg0: i32) -> (i32, i32) {
    %c0_i32 = arith.constant 0 : i32
    %c0_i32_0 = arith.constant 0 : i32
    %c0_i32_1 = arith.constant 0 : i32
    return %c0_i32, %c0_i32_0 : i32, i32
  }
  func.func @transform_2(%arg0: i32) -> (i32, i32) {
    %c0_i32 = arith.constant 0 : i32
    %c0_i32_0 = arith.constant 0 : i32
    %c0_i32_1 = arith.constant 0 : i32
    return %c0_i32, %c0_i32_0 : i32, i32
  }
  func.func @transform_3(%arg0: i32) -> (i32, i32) {
    %c0_i32 = arith.constant 0 : i32
    %c0_i32_0 = arith.constant 0 : i32
    return %arg0, %c0_i32 : i32, i32
  }
}

</mosaic_0001>

<llo_original>
// kernel: tpu_custom_call.1
$region0: #{tpu_custom_call.1}
  #allocation0 [shape = 'u32[]', space=smem, size = 0x4, offset = 0x4, fixed_abs, tag = 'smem constant byte address 0x4 - core index']
  #allocation1 [shape = 'u32[144,128]{1,0:T(1,128)}', space=vmem, size = 0x12000, scoped, tag = 'internal scratch']
  %s0 = inlined_call_operand.vmem [shape: f32[1024,3], index: 0, kind: input, shape index: {}]
  %s1 = inlined_call_operand.hbm [shape: f32[3,288], index: 1, kind: input, shape index: {}]
  %s2 = inlined_call_operand.hbm [shape: f32[1,288], index: 2, kind: input, shape index: {}]
  %s3 = inlined_call_operand.vmem [shape: f32[1024,288], index: 3, kind: output, shape index: {}]
  %s4 = sld [smem:[#allocation0]]
  $region53: #{tpu_custom_call.1} parent=0
    _
  %s6 = ssub.s32 1, %s4
  %s7 = scalar_select 0, %s6, %s4
  $region1: #{tpu_custom_call.1} parent=0
    #allocation2 [shape = 'u8[6144]{0}', space=vmem, size = 0x1800, scoped, tag = 'input window, operand 1, single buffered']
    #allocation3 [shape = 's32[2]{0}', space=sflag, size = 0x8, scoped, tag = 'scoped memory for tpu_custom_call.1']
    #allocation4 [shape = 'u8[1536]{0}', space=vmem, size = 0x800, scoped, tag = 'input window, operand 2, single buffered']
    #allocation5 [shape = 's32[1]{0}', space=sflag, size = 0x4, scoped, tag = 'scoped memory for tpu_custom_call.1']
    %8 = vsyncpa [#allocation3], 0
    %9 = vsyncpa [#allocation5], 0
    loop: start=0, step=1, limit=4
    $region2: #{tpu_custom_call.1} parent=1 // loop_pre_header
      _
    $region3: #{tpu_custom_call.1} parent=1 // loop_header
      %s11 = sphi 0, %s15
      %p12 = scmp.ge.s32.totalorder %s11, 4
      %s21 = sphi 0, %s23
      %s24 = sphi 0, %s21
      %s25 = sphi 0, %s24
      %s41 = sphi 0, %s25
      %s45 = sphi 0, %s45
      %s47 = sphi 0, %s45
      %s48 = sphi 0, %s47
      %s62 = sphi 0, %s48
      %s66 = sphi 0, %s66
      %s68 = sphi 0, %s66
      %s69 = sphi 0, %s68
      %s83 = sphi 0, %s69
      %s89 = sphi 0, %s91
      %s92 = sphi 0, %s89
      %s93 = sphi 0, %s92
      %s109 = sphi 0, %s93
    $region4: #{tpu_custom_call.1} parent=1 // loop_header_branch
      %14 = sbr.rel (%p12) target = $region8
    $region5: #{tpu_custom_call.1} parent=1 // loop_body
      %s16 = ssub.s32 %s11, 1
      %s17 = ssub.s32 %s11, 2
      %s18 = sadd.s32 %s11, 1
      %s19 = ssub.s32 %s11, %s18
      %p20 = scmp.eq.s32.totalorder %s19, 0
      %s22 = sadd.s32 %s21, 1
      %s23 = scalar_select %p20, %s21, %s22
      %p26 = pneg %p20
      %p27 = scmp.eq.s32.totalorder %s11, 1
      %p28 = por %p26, %p27
      %p29 = scmp.ne.s32.totalorder %s21, %s24
      %p30 = scmp.eq.s32.totalorder %s11, 0
      %p31 = por %p29, %p30
      %p32 = scmp.ne.s32.totalorder %s21, %s24
      %p33 = scmp.eq.s32.totalorder %s16, 1
      %p34 = por %p32, %p33
      %p35 = scmp.ne.s32.totalorder %s24, %s25
      %p36 = scmp.eq.s32.totalorder %s16, 0
      %p37 = por %p35, %p36
      %p38 = scmp.ne.s32.totalorder %s24, %s25
      %p39 = scmp.eq.s32.totalorder %s17, 1
      %p40 = por %p38, %p39
      %p42 = scmp.ne.s32.totalorder %s25, %s41
      %p43 = scmp.eq.s32.totalorder %s17, 0
      %p44 = por %p42, %p43
      %s46 = sadd.s32 %s45, 1
      %p49 = scmp.eq.s32.totalorder %s11, 1
      %p50 = scmp.ne.s32.totalorder %s45, %s47
      %p51 = scmp.eq.s32.totalorder %s11, 0
      %p52 = por %p50, %p51
      %p53 = scmp.ne.s32.totalorder %s45, %s47
      %p54 = scmp.eq.s32.totalorder %s16, 1
      %p55 = por %p53, %p54
      %p56 = scmp.ne.s32.totalorder %s47, %s48
      %p57 = scmp.eq.s32.totalorder %s16, 0
      %p58 = por %p56, %p57
      %p59 = scmp.ne.s32.totalorder %s47, %s48
      %p60 = scmp.eq.s32.totalorder %s17, 1
      %p61 = por %p59, %p60
      %p63 = scmp.ne.s32.totalorder %s48, %s62
      %p64 = scmp.eq.s32.totalorder %s17, 0
      %p65 = por %p63, %p64
      %s67 = sadd.s32 %s66, 1
      %p70 = scmp.eq.s32.totalorder %s11, 1
      %p71 = scmp.ne.s32.totalorder %s66, %s68
      %p72 = scmp.eq.s32.totalorder %s11, 0
      %p73 = por %p71, %p72
      %p74 = scmp.ne.s32.totalorder %s66, %s68
      %p75 = scmp.eq.s32.totalorder %s16, 1
      %p76 = por %p74, %p75
      %p77 = scmp.ne.s32.totalorder %s68, %s69
      %p78 = scmp.eq.s32.totalorder %s16, 0
      %p79 = por %p77, %p78
      %p80 = scmp.ne.s32.totalorder %s68, %s69
      %p81 = scmp.eq.s32.totalorder %s17, 1
      %p82 = por %p80, %p81
      %p84 = scmp.ne.s32.totalorder %s69, %s83
      %p85 = scmp.eq.s32.totalorder %s17, 0
      %p86 = por %p84, %p85
      %s87 = ssub.s32 %s11, %s18
      %p88 = scmp.eq.s32.totalorder %s87, 0
      %s90 = sadd.s32 %s89, 1
      %s91 = scalar_select %p88, %s89, %s90
      %p94 = pneg %p88
      %p95 = scmp.eq.s32.totalorder %s11, 1
      %p96 = por %p94, %p95
      %p97 = scmp.ne.s32.totalorder %s89, %s92
      %p98 = scmp.eq.s32.totalorder %s11, 0
      %p99 = por %p97, %p98
      %p100 = scmp.ne.s32.totalorder %s89, %s92
      %p101 = scmp.eq.s32.totalorder %s16, 1
      %p102 = por %p100, %p101
      %p103 = scmp.ne.s32.totalorder %s92, %s93
      %p104 = scmp.eq.s32.totalorder %s16, 0
      %p105 = por %p103, %p104
      %p106 = scmp.ne.s32.totalorder %s92, %s93
      %p107 = scmp.eq.s32.totalorder %s17, 1
      %p108 = por %p106, %p107
      %p110 = scmp.ne.s32.totalorder %s93, %s109
      %p111 = scmp.eq.s32.totalorder %s17, 0
      %p112 = por %p110, %p111
      %p113 = scmp.le.s32.totalorder 1, %s11
      %p114 = scmp.lt.s32.totalorder %s11, 3
      %p115 = pnand %p113, %p114
      %p116 = pneg %p115
      // Predicated region
      $region9: #{tpu_custom_call.1} parent=5 // pred_check
        _
      $region10: #{tpu_custom_call.1} parent=5 // pred_check_branch
        %118 = sbr.rel (%p115) target = $region12
      $region11: #{tpu_custom_call.1} parent=5 // pred_region
        %s119 = ssub.s32 %s11, 1
        // Predicated region
        $region13: #{tpu_custom_call.1} parent=11 // pred_check
          %p120 = pneg %p58
        $region14: #{tpu_custom_call.1} parent=11 // pred_check_branch
          %122 = sbr.rel (%p120) target = $region16
        $region15: #{tpu_custom_call.1} parent=11 // pred_region
          %s124 = ssub.s32 192, 192
          %125 = vsyncadd [#allocation3], %s124
          %s127 = sshll.u32 [#allocation2], 4
          %s128 = int_to_ptr.vmem [resolvable:$true] %s127
          %130 = dma.hbm_to_vmem [thread:$0]  %s1, 192, %s128, [#allocation3]
        $region16: #{tpu_custom_call.1} parent=11 // pred_fallthru
          _
        // Predicated region
        $region17: #{tpu_custom_call.1} parent=11 // pred_check
          %p131 = pneg %p79
        $region18: #{tpu_custom_call.1} parent=11 // pred_check_branch
          %133 = sbr.rel (%p131) target = $region20
        $region19: #{tpu_custom_call.1} parent=11 // pred_region
          %s135 = ssub.s32 48, 48
          %136 = vsyncadd [#allocation5], %s135
          %s138 = sshll.u32 [#allocation4], 4
          %s139 = int_to_ptr.vmem [resolvable:$true] %s138
          %141 = dma.hbm_to_vmem [thread:$0]  %s2, 48, %s139, [#allocation5]
        $region20: #{tpu_custom_call.1} parent=11 // pred_fallthru
          _
      $region12: #{tpu_custom_call.1} parent=5 // pred_fallthru
        _
      %p142 = scmp.lt.s32.totalorder %s11, 2
      // Predicated region
      $region21: #{tpu_custom_call.1} parent=5 // pred_check
        %p143 = pneg %p142
      $region22: #{tpu_custom_call.1} parent=5 // pred_check_branch
        %145 = sbr.rel (%p143) target = $region24
      $region23: #{tpu_custom_call.1} parent=5 // pred_region
        // Predicated region
        $region25: #{tpu_custom_call.1} parent=23 // pred_check
          %p146 = pneg %p31
        $region26: #{tpu_custom_call.1} parent=23 // pred_check_branch
          %148 = sbr.rel (%p146) target = $region28
        $region27: #{tpu_custom_call.1} parent=23 // pred_region
          %s149 = smul.u32 64, %s11
          %p150 = scmp.lt.s32.totalorder %s149, 127
          %s151 = scalar_select %p150, %s149, 127
          %s152 = smul.addr %s151, 8
          %s153 = scalar_lea.vmem %s0, %s152
          %s154 = smul.u32 64, %s11
        $region28: #{tpu_custom_call.1} parent=23 // pred_fallthru
          _
      $region24: #{tpu_custom_call.1} parent=5 // pred_fallthru
        _
      %p155 = scmp.le.s32.totalorder 1, %s11
      %p156 = scmp.lt.s32.totalorder %s11, 3
      %p157 = pnand %p155, %p156
      %p158 = pneg %p157
      // Predicated region
      $region29: #{tpu_custom_call.1} parent=5 // pred_check
        _
      $region30: #{tpu_custom_call.1} parent=5 // pred_check_branch
        %160 = sbr.rel (%p157) target = $region32
      $region31: #{tpu_custom_call.1} parent=5 // pred_region
        %s161 = ssub.s32 %s11, 1
        // Predicated region
        $region33: #{tpu_custom_call.1} parent=31 // pred_check
          %p162 = pneg %p58
        $region34: #{tpu_custom_call.1} parent=31 // pred_check_branch
          %164 = sbr.rel (%p162) target = $region36
        $region35: #{tpu_custom_call.1} parent=31 // pred_region
          %165 = dma.done [#allocation3], 192
        $region36: #{tpu_custom_call.1} parent=31 // pred_fallthru
          _
        // Predicated region
        $region37: #{tpu_custom_call.1} parent=31 // pred_check
          %p166 = pneg %p79
        $region38: #{tpu_custom_call.1} parent=31 // pred_check_branch
          %168 = sbr.rel (%p166) target = $region40
        $region39: #{tpu_custom_call.1} parent=31 // pred_region
          %169 = dma.done [#allocation5], 48
        $region40: #{tpu_custom_call.1} parent=31 // pred_fallthru
          _
        %s170 = smul.u32 64, %s16
        %p171 = scmp.lt.s32.totalorder %s170, 127
        %s172 = scalar_select %p171, %s170, 127
        %s173 = smul.addr %s172, 8
        %s174 = scalar_lea.vmem %s0, %s173
        %p175 = pneg %p37
        %p176 = pneg %p34
        %p177 = pneg %p58
        %p178 = pneg %p55
        %p179 = pneg %p79
        %p180 = pneg %p76
        %p181 = pneg %p105
        %p182 = pneg %p102
        %s183 = smul.u32 64, %s16
        %p184 = scmp.lt.s32.totalorder %s183, 127
        %s185 = scalar_select %p184, %s183, 127
        %s186 = smul.addr %s185, 3
        %s187 = smul.addr %s186, 8
        %s188 = scalar_lea.vmem %s3, %s187
        %s189 = smul.u32 64, %s16
        %p190 = scmp.lt.s32.totalorder %s189, 127
        %s191 = scalar_select %p190, %s189, 127
        %s192 = smul.addr %s191, 8
        %s193 = scalar_lea.vmem %s0, %s192
        %s194 = smul.u32 64, %s16
        %s195 = smul.u32 64, %s16
        %p196 = scmp.lt.s32.totalorder %s195, 127
        %s197 = scalar_select %p196, %s195, 127
        %s198 = smul.addr %s197, 3
        %s199 = smul.addr %s198, 8
        %s200 = scalar_lea.vmem %s3, %s199
        %s201 = smul.u32 64, %s16
        %v202 = vld [vmem:[#allocation2] sm:$0x77]
        %v203 = vld [vmem:[#allocation2 + $0x8] sm:$0x7]
        %v204 = vld [vmem:[#allocation4] sm:$0x7]
        %v205 = vld [vmem:[%s193] sm:$0xff]
        %v206 = vld [vmem:[%s193 + $0x8] sm:$0xff]
        %v207 = vld [vmem:[%s193 + $0x10] sm:$0xff]
        %v208 = vld [vmem:[%s193 + $0x18] sm:$0xff]
        %v209 = vld [vmem:[%s193 + $0x20] sm:$0xff]
        %v210 = vld [vmem:[%s193 + $0x28] sm:$0xff]
        %v211 = vld [vmem:[%s193 + $0x30] sm:$0xff]
        %v212 = vld [vmem:[%s193 + $0x38] sm:$0xff]
        %v213 = vld [vmem:[%s193 + $0x40] sm:$0xff]
        %v214 = vld [vmem:[%s193 + $0x48] sm:$0xff]
        %v215 = vld [vmem:[%s193 + $0x50] sm:$0xff]
        %v216 = vld [vmem:[%s193 + $0x58] sm:$0xff]
        %v217 = vld [vmem:[%s193 + $0x60] sm:$0xff]
        %v218 = vld [vmem:[%s193 + $0x68] sm:$0xff]
        %v219 = vld [vmem:[%s193 + $0x70] sm:$0xff]
        %v220 = vld [vmem:[%s193 + $0x78] sm:$0xff]
        %v221 = vld [vmem:[%s193 + $0x80] sm:$0xff]
        %v222 = vld [vmem:[%s193 + $0x88] sm:$0xff]
        %v223 = vld [vmem:[%s193 + $0x90] sm:$0xff]
        %v224 = vld [vmem:[%s193 + $0x98] sm:$0xff]
        %v225 = vld [vmem:[%s193 + $0xa0] sm:$0xff]
        %v226 = vld [vmem:[%s193 + $0xa8] sm:$0xff]
        %v227 = vld [vmem:[%s193 + $0xb0] sm:$0xff]
        %v228 = vld [vmem:[%s193 + $0xb8] sm:$0xff]
        %v229 = vld [vmem:[%s193 + $0xc0] sm:$0xff]
        %v230 = vld [vmem:[%s193 + $0xc8] sm:$0xff]
        %v231 = vld [vmem:[%s193 + $0xd0] sm:$0xff]
        %v232 = vld [vmem:[%s193 + $0xd8] sm:$0xff]
        %v233 = vld [vmem:[%s193 + $0xe0] sm:$0xff]
        %v234 = vld [vmem:[%s193 + $0xe8] sm:$0xff]
        %v235 = vld [vmem:[%s193 + $0xf0] sm:$0xff]
        %v236 = vld [vmem:[%s193 + $0xf8] sm:$0xff]
        %v237 = vld [vmem:[%s193 + $0x100] sm:$0xff]
        %v238 = vld [vmem:[%s193 + $0x108] sm:$0xff]
        %v239 = vld [vmem:[%s193 + $0x110] sm:$0xff]
        %v240 = vld [vmem:[%s193 + $0x118] sm:$0xff]
        %v241 = vld [vmem:[%s193 + $0x120] sm:$0xff]
        %v242 = vld [vmem:[%s193 + $0x128] sm:$0xff]
        %v243 = vld [vmem:[%s193 + $0x130] sm:$0xff]
        %v244 = vld [vmem:[%s193 + $0x138] sm:$0xff]
        %v245 = vld [vmem:[%s193 + $0x140] sm:$0xff]
        %v246 = vld [vmem:[%s193 + $0x148] sm:$0xff]
        %v247 = vld [vmem:[%s193 + $0x150] sm:$0xff]
        %v248 = vld [vmem:[%s193 + $0x158] sm:$0xff]
        %v249 = vld [vmem:[%s193 + $0x160] sm:$0xff]
        %v250 = vld [vmem:[%s193 + $0x168] sm:$0xff]
        %v251 = vld [vmem:[%s193 + $0x170] sm:$0xff]
        %v252 = vld [vmem:[%s193 + $0x178] sm:$0xff]
        %v253 = vld [vmem:[%s193 + $0x180] sm:$0xff]
        %v254 = vld [vmem:[%s193 + $0x188] sm:$0xff]
        %v255 = vld [vmem:[%s193 + $0x190] sm:$0xff]
        %v256 = vld [vmem:[%s193 + $0x198] sm:$0xff]
        %v257 = vld [vmem:[%s193 + $0x1a0] sm:$0xff]
        %v258 = vld [vmem:[%s193 + $0x1a8] sm:$0xff]
        %v259 = vld [vmem:[%s193 + $0x1b0] sm:$0xff]
        %v260 = vld [vmem:[%s193 + $0x1b8] sm:$0xff]
        %v261 = vld [vmem:[%s193 + $0x1c0] sm:$0xff]
        %v262 = vld [vmem:[%s193 + $0x1c8] sm:$0xff]
        %v263 = vld [vmem:[%s193 + $0x1d0] sm:$0xff]
        %v264 = vld [vmem:[%s193 + $0x1d8] sm:$0xff]
        %v265 = vld [vmem:[%s193 + $0x1e0] sm:$0xff]
        %v266 = vld [vmem:[%s193 + $0x1e8] sm:$0xff]
        %v267 = vld [vmem:[%s193 + $0x1f0] sm:$0xff]
        %v268 = vld [vmem:[%s193 + $0x1f8] sm:$0xff]
        %270 = vset.pattern.permute.xlu0 0
        %271 = vperm.xlu0 %270, %v205
        %v272 = vpop.permute.xlu0 %271
        %275 = vset.pattern.permute.xlu0 0
        %276 = vperm.xlu0 %275, %v206
        %v277 = vpop.permute.xlu0 %276
        %280 = vset.pattern.permute.xlu0 0
        %281 = vperm.xlu0 %280, %v207
        %v282 = vpop.permute.xlu0 %281
        %285 = vset.pattern.permute.xlu0 0
        %286 = vperm.xlu0 %285, %v208
        %v287 = vpop.permute.xlu0 %286
        %290 = vset.pattern.permute.xlu0 0
        %291 = vperm.xlu0 %290, %v209
        %v292 = vpop.permute.xlu0 %291
        %295 = vset.pattern.permute.xlu0 0
        %296 = vperm.xlu0 %295, %v210
        %v297 = vpop.permute.xlu0 %296
        %300 = vset.pattern.permute.xlu0 0
        %301 = vperm.xlu0 %300, %v211
        %v302 = vpop.permute.xlu0 %301
        %305 = vset.pattern.permute.xlu0 0
        %306 = vperm.xlu0 %305, %v212
        %v307 = vpop.permute.xlu0 %306
        %310 = vset.pattern.permute.xlu0 0
        %311 = vperm.xlu0 %310, %v213
        %v312 = vpop.permute.xlu0 %311
        %315 = vset.pattern.permute.xlu0 0
        %316 = vperm.xlu0 %315, %v214
        %v317 = vpop.permute.xlu0 %316
        %320 = vset.pattern.permute.xlu0 0
        %321 = vperm.xlu0 %320, %v215
        %v322 = vpop.permute.xlu0 %321
        %325 = vset.pattern.permute.xlu0 0
        %326 = vperm.xlu0 %325, %v216
        %v327 = vpop.permute.xlu0 %326
        %330 = vset.pattern.permute.xlu0 0
        %331 = vperm.xlu0 %330, %v217
        %v332 = vpop.permute.xlu0 %331
        %335 = vset.pattern.permute.xlu0 0
        %336 = vperm.xlu0 %335, %v218
        %v337 = vpop.permute.xlu0 %336
        %340 = vset.pattern.permute.xlu0 0
        %341 = vperm.xlu0 %340, %v219
        %v342 = vpop.permute.xlu0 %341
        %345 = vset.pattern.permute.xlu0 0
        %346 = vperm.xlu0 %345, %v220
        %v347 = vpop.permute.xlu0 %346
        %350 = vset.pattern.permute.xlu0 0
        %351 = vperm.xlu0 %350, %v221
        %v352 = vpop.permute.xlu0 %351
        %355 = vset.pattern.permute.xlu0 0
        %356 = vperm.xlu0 %355, %v222
        %v357 = vpop.permute.xlu0 %356
        %360 = vset.pattern.permute.xlu0 0
        %361 = vperm.xlu0 %360, %v223
        %v362 = vpop.permute.xlu0 %361
        %365 = vset.pattern.permute.xlu0 0
        %366 = vperm.xlu0 %365, %v224
        %v367 = vpop.permute.xlu0 %366
        %370 = vset.pattern.permute.xlu0 0
        %371 = vperm.xlu0 %370, %v225
        %v372 = vpop.permute.xlu0 %371
        %375 = vset.pattern.permute.xlu0 0
        %376 = vperm.xlu0 %375, %v226
        %v377 = vpop.permute.xlu0 %376
        %380 = vset.pattern.permute.xlu0 0
        %381 = vperm.xlu0 %380, %v227
        %v382 = vpop.permute.xlu0 %381
        %385 = vset.pattern.permute.xlu0 0
        %386 = vperm.xlu0 %385, %v228
        %v387 = vpop.permute.xlu0 %386
        %390 = vset.pattern.permute.xlu0 0
        %391 = vperm.xlu0 %390, %v229
        %v392 = vpop.permute.xlu0 %391
        %395 = vset.pattern.permute.xlu0 0
        %396 = vperm.xlu0 %395, %v230
        %v397 = vpop.permute.xlu0 %396
        %400 = vset.pattern.permute.xlu0 0
        %401 = vperm.xlu0 %400, %v231
        %v402 = vpop.permute.xlu0 %401
        %405 = vset.pattern.permute.xlu0 0
        %406 = vperm.xlu0 %405, %v232
        %v407 = vpop.permute.xlu0 %406
        %410 = vset.pattern.permute.xlu0 0
        %411 = vperm.xlu0 %410, %v233
        %v412 = vpop.permute.xlu0 %411
        %415 = vset.pattern.permute.xlu0 0
        %416 = vperm.xlu0 %415, %v234
        %v417 = vpop.permute.xlu0 %416
        %420 = vset.pattern.permute.xlu0 0
        %421 = vperm.xlu0 %420, %v235
        %v422 = vpop.permute.xlu0 %421
        %425 = vset.pattern.permute.xlu0 0
        %426 = vperm.xlu0 %425, %v236
        %v427 = vpop.permute.xlu0 %426
        %430 = vset.pattern.permute.xlu0 0
        %431 = vperm.xlu0 %430, %v237
        %v432 = vpop.permute.xlu0 %431
        %435 = vset.pattern.permute.xlu0 0
        %436 = vperm.xlu0 %435, %v238
        %v437 = vpop.permute.xlu0 %436
        %440 = vset.pattern.permute.xlu0 0
        %441 = vperm.xlu0 %440, %v239
        %v442 = vpop.permute.xlu0 %441
        %445 = vset.pattern.permute.xlu0 0
        %446 = vperm.xlu0 %445, %v240
        %v447 = vpop.permute.xlu0 %446
        %450 = vset.pattern.permute.xlu0 0
        %451 = vperm.xlu0 %450, %v241
        %v452 = vpop.permute.xlu0 %451
        %455 = vset.pattern.permute.xlu0 0
        %456 = vperm.xlu0 %455, %v242
        %v457 = vpop.permute.xlu0 %456
        %460 = vset.pattern.permute.xlu0 0
        %461 = vperm.xlu0 %460, %v243
        %v462 = vpop.permute.xlu0 %461
        %465 = vset.pattern.permute.xlu0 0
        %466 = vperm.xlu0 %465, %v244
        %v467 = vpop.permute.xlu0 %466
        %470 = vset.pattern.permute.xlu0 0
        %471 = vperm.xlu0 %470, %v245
        %v472 = vpop.permute.xlu0 %471
        %475 = vset.pattern.permute.xlu0 0
        %476 = vperm.xlu0 %475, %v246
        %v477 = vpop.permute.xlu0 %476
        %480 = vset.pattern.permute.xlu0 0
        %481 = vperm.xlu0 %480, %v247
        %v482 = vpop.permute.xlu0 %481
        %485 = vset.pattern.permute.xlu0 0
        %486 = vperm.xlu0 %485, %v248
        %v487 = vpop.permute.xlu0 %486
        %490 = vset.pattern.permute.xlu0 0
        %491 = vperm.xlu0 %490, %v249
        %v492 = vpop.permute.xlu0 %491
        %495 = vset.pattern.permute.xlu0 0
        %496 = vperm.xlu0 %495, %v250
        %v497 = vpop.permute.xlu0 %496
        %500 = vset.pattern.permute.xlu0 0
        %501 = vperm.xlu0 %500, %v251
        %v502 = vpop.permute.xlu0 %501
        %505 = vset.pattern.permute.xlu0 0
        %506 = vperm.xlu0 %505, %v252
        %v507 = vpop.permute.xlu0 %506
        %510 = vset.pattern.permute.xlu0 0
        %511 = vperm.xlu0 %510, %v253
        %v512 = vpop.permute.xlu0 %511
        %515 = vset.pattern.permute.xlu0 0
        %516 = vperm.xlu0 %515, %v254
        %v517 = vpop.permute.xlu0 %516
        %520 = vset.pattern.permute.xlu0 0
        %521 = vperm.xlu0 %520, %v255
        %v522 = vpop.permute.xlu0 %521
        %525 = vset.pattern.permute.xlu0 0
        %526 = vperm.xlu0 %525, %v256
        %v527 = vpop.permute.xlu0 %526
        %530 = vset.pattern.permute.xlu0 0
        %531 = vperm.xlu0 %530, %v257
        %v532 = vpop.permute.xlu0 %531
        %535 = vset.pattern.permute.xlu0 0
        %536 = vperm.xlu0 %535, %v258
        %v537 = vpop.permute.xlu0 %536
        %540 = vset.pattern.permute.xlu0 0
        %541 = vperm.xlu0 %540, %v259
        %v542 = vpop.permute.xlu0 %541
        %545 = vset.pattern.permute.xlu0 0
        %546 = vperm.xlu0 %545, %v260
        %v547 = vpop.permute.xlu0 %546
        %550 = vset.pattern.permute.xlu0 0
        %551 = vperm.xlu0 %550, %v261
        %v552 = vpop.permute.xlu0 %551
        %555 = vset.pattern.permute.xlu0 0
        %556 = vperm.xlu0 %555, %v262
        %v557 = vpop.permute.xlu0 %556
        %560 = vset.pattern.permute.xlu0 0
        %561 = vperm.xlu0 %560, %v263
        %v562 = vpop.permute.xlu0 %561
        %565 = vset.pattern.permute.xlu0 0
        %566 = vperm.xlu0 %565, %v264
        %v567 = vpop.permute.xlu0 %566
        %570 = vset.pattern.permute.xlu0 0
        %571 = vperm.xlu0 %570, %v265
        %v572 = vpop.permute.xlu0 %571
        %575 = vset.pattern.permute.xlu0 0
        %576 = vperm.xlu0 %575, %v266
        %v577 = vpop.permute.xlu0 %576
        %580 = vset.pattern.permute.xlu0 0
        %581 = vperm.xlu0 %580, %v267
        %v582 = vpop.permute.xlu0 %581
        %585 = vset.pattern.permute.xlu0 0
        %586 = vperm.xlu0 %585, %v268
        %v587 = vpop.permute.xlu0 %586
        %v591 = vlaneseq
        %v592 = vshrl.u32 %v591, 7
        %v593 = vsub.s32 0, %v592
        %v594 = vrot.slane %v202, %v593
        %v595 = vlaneseq
        %v596 = vshrl.u32 %v595, 7
        %v597 = vsub.s32 4, %v596
        %v598 = vrot.slane %v202, %v597
        %v599 = vlaneseq
        %v600 = vshrl.u32 %v599, 7
        %v601 = vsub.s32 0, %v600
        %v602 = vrot.slane %v203, %v601
        %v606 = vlaneseq
        %v607 = vshrl.u32 %v606, 7
        %v608 = vsub.s32 0, %v607
        %v609 = vrot.slane %v594, %v608
        %v610 = vlaneseq
        %v611 = vshrl.u32 %v610, 7
        %v612 = vsub.s32 0, %v611
        %v613 = vrot.slane %v598, %v612
        %v614 = vlaneseq
        %v615 = vshrl.u32 %v614, 7
        %v616 = vsub.s32 0, %v615
        %v617 = vrot.slane %v602, %v616
        %v618 = vmul.f32 %v272, %v609
        %v619 = vmul.f32 %v272, %v613
        %v620 = vmul.f32 %v272, %v617
        %v621 = vmul.f32 %v277, %v609
        %v622 = vmul.f32 %v277, %v613
        %v623 = vmul.f32 %v277, %v617
        %v624 = vmul.f32 %v282, %v609
        %v625 = vmul.f32 %v282, %v613
        %v626 = vmul.f32 %v282, %v617
        %v627 = vmul.f32 %v287, %v609
        %v628 = vmul.f32 %v287, %v613
        %v629 = vmul.f32 %v287, %v617
        %v630 = vmul.f32 %v292, %v609
        %v631 = vmul.f32 %v292, %v613
        %v632 = vmul.f32 %v292, %v617
        %v633 = vmul.f32 %v297, %v609
        %v634 = vmul.f32 %v297, %v613
        %v635 = vmul.f32 %v297, %v617
        %v636 = vmul.f32 %v302, %v609
        %v637 = vmul.f32 %v302, %v613
        %v638 = vmul.f32 %v302, %v617
        %v639 = vmul.f32 %v307, %v609
        %v640 = vmul.f32 %v307, %v613
        %v641 = vmul.f32 %v307, %v617
        %v642 = vmul.f32 %v312, %v609
        %v643 = vmul.f32 %v312, %v613
        %v644 = vmul.f32 %v312, %v617
        %v645 = vmul.f32 %v317, %v609
        %v646 = vmul.f32 %v317, %v613
        %v647 = vmul.f32 %v317, %v617
        %v648 = vmul.f32 %v322, %v609
        %v649 = vmul.f32 %v322, %v613
        %v650 = vmul.f32 %v322, %v617
        %v651 = vmul.f32 %v327, %v609
        %v652 = vmul.f32 %v327, %v613
        %v653 = vmul.f32 %v327, %v617
        %v654 = vmul.f32 %v332, %v609
        %v655 = vmul.f32 %v332, %v613
        %v656 = vmul.f32 %v332, %v617
        %v657 = vmul.f32 %v337, %v609
        %v658 = vmul.f32 %v337, %v613
        %v659 = vmul.f32 %v337, %v617
        %v660 = vmul.f32 %v342, %v609
        %v661 = vmul.f32 %v342, %v613
        %v662 = vmul.f32 %v342, %v617
        %v663 = vmul.f32 %v347, %v609
        %v664 = vmul.f32 %v347, %v613
        %v665 = vmul.f32 %v347, %v617
        %v666 = vmul.f32 %v352, %v609
        %v667 = vmul.f32 %v352, %v613
        %v668 = vmul.f32 %v352, %v617
        %v669 = vmul.f32 %v357, %v609
        %v670 = vmul.f32 %v357, %v613
        %v671 = vmul.f32 %v357, %v617
        %v672 = vmul.f32 %v362, %v609
        %v673 = vmul.f32 %v362, %v613
        %v674 = vmul.f32 %v362, %v617
        %v675 = vmul.f32 %v367, %v609
        %v676 = vmul.f32 %v367, %v613
        %v677 = vmul.f32 %v367, %v617
        %v678 = vmul.f32 %v372, %v609
        %v679 = vmul.f32 %v372, %v613
        %v680 = vmul.f32 %v372, %v617
        %v681 = vmul.f32 %v377, %v609
        %v682 = vmul.f32 %v377, %v613
        %v683 = vmul.f32 %v377, %v617
        %v684 = vmul.f32 %v382, %v609
        %v685 = vmul.f32 %v382, %v613
        %v686 = vmul.f32 %v382, %v617
        %v687 = vmul.f32 %v387, %v609
        %v688 = vmul.f32 %v387, %v613
        %v689 = vmul.f32 %v387, %v617
        %v690 = vmul.f32 %v392, %v609
        %v691 = vmul.f32 %v392, %v613
        %v692 = vmul.f32 %v392, %v617
        %v693 = vmul.f32 %v397, %v609
        %v694 = vmul.f32 %v397, %v613
        %v695 = vmul.f32 %v397, %v617
        %v696 = vmul.f32 %v402, %v609
        %v697 = vmul.f32 %v402, %v613
        %v698 = vmul.f32 %v402, %v617
        %v699 = vmul.f32 %v407, %v609
        %v700 = vmul.f32 %v407, %v613
        %v701 = vmul.f32 %v407, %v617
        %v702 = vmul.f32 %v412, %v609
        %v703 = vmul.f32 %v412, %v613
        %v704 = vmul.f32 %v412, %v617
        %v705 = vmul.f32 %v417, %v609
        %v706 = vmul.f32 %v417, %v613
        %v707 = vmul.f32 %v417, %v617
        %v708 = vmul.f32 %v422, %v609
        %v709 = vmul.f32 %v422, %v613
        %v710 = vmul.f32 %v422, %v617
        %v711 = vmul.f32 %v427, %v609
        %v712 = vmul.f32 %v427, %v613
        %v713 = vmul.f32 %v427, %v617
        %v714 = vmul.f32 %v432, %v609
        %v715 = vmul.f32 %v432, %v613
        %v716 = vmul.f32 %v432, %v617
        %v717 = vmul.f32 %v437, %v609
        %v718 = vmul.f32 %v437, %v613
        %v719 = vmul.f32 %v437, %v617
        %v720 = vmul.f32 %v442, %v609
        %v721 = vmul.f32 %v442, %v613
        %v722 = vmul.f32 %v442, %v617
        %v723 = vmul.f32 %v447, %v609
        %v724 = vmul.f32 %v447, %v613
        %v725 = vmul.f32 %v447, %v617
        %v726 = vmul.f32 %v452, %v609
        %v727 = vmul.f32 %v452, %v613
        %v728 = vmul.f32 %v452, %v617
        %v729 = vmul.f32 %v457, %v609
        %v730 = vmul.f32 %v457, %v613
        %v731 = vmul.f32 %v457, %v617
        %v732 = vmul.f32 %v462, %v609
        %v733 = vmul.f32 %v462, %v613
        %v734 = vmul.f32 %v462, %v617
        %v735 = vmul.f32 %v467, %v609
        %v736 = vmul.f32 %v467, %v613
        %v737 = vmul.f32 %v467, %v617
        %v738 = vmul.f32 %v472, %v609
        %v739 = vmul.f32 %v472, %v613
        %v740 = vmul.f32 %v472, %v617
        %v741 = vmul.f32 %v477, %v609
        %v742 = vmul.f32 %v477, %v613
        %v743 = vmul.f32 %v477, %v617
        %v744 = vmul.f32 %v482, %v609
        %v745 = vmul.f32 %v482, %v613
        %v746 = vmul.f32 %v482, %v617
        %v747 = vmul.f32 %v487, %v609
        %v748 = vmul.f32 %v487, %v613
        %v749 = vmul.f32 %v487, %v617
        %v750 = vmul.f32 %v492, %v609
        %v751 = vmul.f32 %v492, %v613
        %v752 = vmul.f32 %v492, %v617
        %v753 = vmul.f32 %v497, %v609
        %v754 = vmul.f32 %v497, %v613
        %v755 = vmul.f32 %v497, %v617
        %v756 = vmul.f32 %v502, %v609
        %v757 = vmul.f32 %v502, %v613
        %v758 = vmul.f32 %v502, %v617
        %v759 = vmul.f32 %v507, %v609
        %v760 = vmul.f32 %v507, %v613
        %v761 = vmul.f32 %v507, %v617
        %v762 = vmul.f32 %v512, %v609
        %v763 = vmul.f32 %v512, %v613
        %v764 = vmul.f32 %v512, %v617
        %v765 = vmul.f32 %v517, %v609
        %v766 = vmul.f32 %v517, %v613
        %v767 = vmul.f32 %v517, %v617
        %v768 = vmul.f32 %v522, %v609
        %v769 = vmul.f32 %v522, %v613
        %v770 = vmul.f32 %v522, %v617
        %v771 = vmul.f32 %v527, %v609
        %v772 = vmul.f32 %v527, %v613
        %v773 = vmul.f32 %v527, %v617
        %v774 = vmul.f32 %v532, %v609
        %v775 = vmul.f32 %v532, %v613
        %v776 = vmul.f32 %v532, %v617
        %v777 = vmul.f32 %v537, %v609
        %v778 = vmul.f32 %v537, %v613
        %v779 = vmul.f32 %v537, %v617
        %v780 = vmul.f32 %v542, %v609
        %v781 = vmul.f32 %v542, %v613
        %v782 = vmul.f32 %v542, %v617
        %v783 = vmul.f32 %v547, %v609
        %v784 = vmul.f32 %v547, %v613
        %v785 = vmul.f32 %v547, %v617
        %v786 = vmul.f32 %v552, %v609
        %v787 = vmul.f32 %v552, %v613
        %v788 = vmul.f32 %v552, %v617
        %v789 = vmul.f32 %v557, %v609
        %v790 = vmul.f32 %v557, %v613
        %v791 = vmul.f32 %v557, %v617
        %v792 = vmul.f32 %v562, %v609
        %v793 = vmul.f32 %v562, %v613
        %v794 = vmul.f32 %v562, %v617
        %v795 = vmul.f32 %v567, %v609
        %v796 = vmul.f32 %v567, %v613
        %v797 = vmul.f32 %v567, %v617
        %v798 = vmul.f32 %v572, %v609
        %v799 = vmul.f32 %v572, %v613
        %v800 = vmul.f32 %v572, %v617
        %v801 = vmul.f32 %v577, %v609
        %v802 = vmul.f32 %v577, %v613
        %v803 = vmul.f32 %v577, %v617
        %v804 = vmul.f32 %v582, %v609
        %v805 = vmul.f32 %v582, %v613
        %v806 = vmul.f32 %v582, %v617
        %v807 = vmul.f32 %v587, %v609
        %v808 = vmul.f32 %v587, %v613
        %v809 = vmul.f32 %v587, %v617
        %v811 = vlaneseq
        %v812 = vshrl.u32 %v811, 7
        %v813 = vsub.s32 0, %v812
        %v814 = vrot.slane %v204, %v813
        %v815 = vlaneseq
        %v816 = vshrl.u32 %v815, 7
        %v817 = vsub.s32 1, %v816
        %v818 = vrot.slane %v204, %v817
        %v819 = vlaneseq
        %v820 = vshrl.u32 %v819, 7
        %v821 = vsub.s32 2, %v820
        %v822 = vrot.slane %v204, %v821
        %v826 = vadd.f32 %v618, %v814
        %v827 = vadd.f32 %v619, %v818
        %v828 = vadd.f32 %v620, %v822
        %v829 = vadd.f32 %v621, %v814
        %v830 = vadd.f32 %v622, %v818
        %v831 = vadd.f32 %v623, %v822
        %v832 = vadd.f32 %v624, %v814
        %v833 = vadd.f32 %v625, %v818
        %v834 = vadd.f32 %v626, %v822
        %v835 = vadd.f32 %v627, %v814
        %v836 = vadd.f32 %v628, %v818
        %v837 = vadd.f32 %v629, %v822
        %v838 = vadd.f32 %v630, %v814
        %v839 = vadd.f32 %v631, %v818
        %v840 = vadd.f32 %v632, %v822
        %v841 = vadd.f32 %v633, %v814
        %v842 = vadd.f32 %v634, %v818
        %v843 = vadd.f32 %v635, %v822
        %v844 = vadd.f32 %v636, %v814
        %v845 = vadd.f32 %v637, %v818
        %v846 = vadd.f32 %v638, %v822
        %v847 = vadd.f32 %v639, %v814
        %v848 = vadd.f32 %v640, %v818
        %v849 = vadd.f32 %v641, %v822
        %v850 = vadd.f32 %v642, %v814
        %v851 = vadd.f32 %v643, %v818
        %v852 = vadd.f32 %v644, %v822
        %v853 = vadd.f32 %v645, %v814
        %v854 = vadd.f32 %v646, %v818
        %v855 = vadd.f32 %v647, %v822
        %v856 = vadd.f32 %v648, %v814
        %v857 = vadd.f32 %v649, %v818
        %v858 = vadd.f32 %v650, %v822
        %v859 = vadd.f32 %v651, %v814
        %v860 = vadd.f32 %v652, %v818
        %v861 = vadd.f32 %v653, %v822
        %v862 = vadd.f32 %v654, %v814
        %v863 = vadd.f32 %v655, %v818
        %v864 = vadd.f32 %v656, %v822
        %v865 = vadd.f32 %v657, %v814
        %v866 = vadd.f32 %v658, %v818
        %v867 = vadd.f32 %v659, %v822
        %v868 = vadd.f32 %v660, %v814
        %v869 = vadd.f32 %v661, %v818
        %v870 = vadd.f32 %v662, %v822
        %v871 = vadd.f32 %v663, %v814
        %v872 = vadd.f32 %v664, %v818
        %v873 = vadd.f32 %v665, %v822
        %v874 = vadd.f32 %v666, %v814
        %v875 = vadd.f32 %v667, %v818
        %v876 = vadd.f32 %v668, %v822
        %v877 = vadd.f32 %v669, %v814
        %v878 = vadd.f32 %v670, %v818
        %v879 = vadd.f32 %v671, %v822
        %v880 = vadd.f32 %v672, %v814
        %v881 = vadd.f32 %v673, %v818
        %v882 = vadd.f32 %v674, %v822
        %v883 = vadd.f32 %v675, %v814
        %v884 = vadd.f32 %v676, %v818
        %v885 = vadd.f32 %v677, %v822
        %v886 = vadd.f32 %v678, %v814
        %v887 = vadd.f32 %v679, %v818
        %v888 = vadd.f32 %v680, %v822
        %v889 = vadd.f32 %v681, %v814
        %v890 = vadd.f32 %v682, %v818
        %v891 = vadd.f32 %v683, %v822
        %v892 = vadd.f32 %v684, %v814
        %v893 = vadd.f32 %v685, %v818
        %v894 = vadd.f32 %v686, %v822
        %v895 = vadd.f32 %v687, %v814
        %v896 = vadd.f32 %v688, %v818
        %v897 = vadd.f32 %v689, %v822
        %v898 = vadd.f32 %v690, %v814
        %v899 = vadd.f32 %v691, %v818
        %v900 = vadd.f32 %v692, %v822
        %v901 = vadd.f32 %v693, %v814
        %v902 = vadd.f32 %v694, %v818
        %v903 = vadd.f32 %v695, %v822
        %v904 = vadd.f32 %v696, %v814
        %v905 = vadd.f32 %v697, %v818
        %v906 = vadd.f32 %v698, %v822
        %v907 = vadd.f32 %v699, %v814
        %v908 = vadd.f32 %v700, %v818
        %v909 = vadd.f32 %v701, %v822
        %v910 = vadd.f32 %v702, %v814
        %v911 = vadd.f32 %v703, %v818
        %v912 = vadd.f32 %v704, %v822
        %v913 = vadd.f32 %v705, %v814
        %v914 = vadd.f32 %v706, %v818
        %v915 = vadd.f32 %v707, %v822
        %v916 = vadd.f32 %v708, %v814
        %v917 = vadd.f32 %v709, %v818
        %v918 = vadd.f32 %v710, %v822
        %v919 = vadd.f32 %v711, %v814
        %v920 = vadd.f32 %v712, %v818
        %v921 = vadd.f32 %v713, %v822
        %v922 = vadd.f32 %v714, %v814
        %v923 = vadd.f32 %v715, %v818
        %v924 = vadd.f32 %v716, %v822
        %v925 = vadd.f32 %v717, %v814
        %v926 = vadd.f32 %v718, %v818
        %v927 = vadd.f32 %v719, %v822
        %v928 = vadd.f32 %v720, %v814
        %v929 = vadd.f32 %v721, %v818
        %v930 = vadd.f32 %v722, %v822
        %v931 = vadd.f32 %v723, %v814
        %v932 = vadd.f32 %v724, %v818
        %v933 = vadd.f32 %v725, %v822
        %v934 = vadd.f32 %v726, %v814
        %v935 = vadd.f32 %v727, %v818
        %v936 = vadd.f32 %v728, %v822
        %v937 = vadd.f32 %v729, %v814
        %v938 = vadd.f32 %v730, %v818
        %v939 = vadd.f32 %v731, %v822
        %v940 = vadd.f32 %v732, %v814
        %v941 = vadd.f32 %v733, %v818
        %v942 = vadd.f32 %v734, %v822
        %v943 = vadd.f32 %v735, %v814
        %v944 = vadd.f32 %v736, %v818
        %v945 = vadd.f32 %v737, %v822
        %v946 = vadd.f32 %v738, %v814
        %v947 = vadd.f32 %v739, %v818
        %v948 = vadd.f32 %v740, %v822
        %v949 = vadd.f32 %v741, %v814
        %v950 = vadd.f32 %v742, %v818
        %v951 = vadd.f32 %v743, %v822
        %v952 = vadd.f32 %v744, %v814
        %v953 = vadd.f32 %v745, %v818
        %v954 = vadd.f32 %v746, %v822
        %v955 = vadd.f32 %v747, %v814
        %v956 = vadd.f32 %v748, %v818
        %v957 = vadd.f32 %v749, %v822
        %v958 = vadd.f32 %v750, %v814
        %v959 = vadd.f32 %v751, %v818
        %v960 = vadd.f32 %v752, %v822
        %v961 = vadd.f32 %v753, %v814
        %v962 = vadd.f32 %v754, %v818
        %v963 = vadd.f32 %v755, %v822
        %v964 = vadd.f32 %v756, %v814
        %v965 = vadd.f32 %v757, %v818
        %v966 = vadd.f32 %v758, %v822
        %v967 = vadd.f32 %v759, %v814
        %v968 = vadd.f32 %v760, %v818
        %v969 = vadd.f32 %v761, %v822
        %v970 = vadd.f32 %v762, %v814
        %v971 = vadd.f32 %v763, %v818
        %v972 = vadd.f32 %v764, %v822
        %v973 = vadd.f32 %v765, %v814
        %v974 = vadd.f32 %v766, %v818
        %v975 = vadd.f32 %v767, %v822
        %v976 = vadd.f32 %v768, %v814
        %v977 = vadd.f32 %v769, %v818
        %v978 = vadd.f32 %v770, %v822
        %v979 = vadd.f32 %v771, %v814
        %v980 = vadd.f32 %v772, %v818
        %v981 = vadd.f32 %v773, %v822
        %v982 = vadd.f32 %v774, %v814
        %v983 = vadd.f32 %v775, %v818
        %v984 = vadd.f32 %v776, %v822
        %v985 = vadd.f32 %v777, %v814
        %v986 = vadd.f32 %v778, %v818
        %v987 = vadd.f32 %v779, %v822
        %v988 = vadd.f32 %v780, %v814
        %v989 = vadd.f32 %v781, %v818
        %v990 = vadd.f32 %v782, %v822
        %v991 = vadd.f32 %v783, %v814
        %v992 = vadd.f32 %v784, %v818
        %v993 = vadd.f32 %v785, %v822
        %v994 = vadd.f32 %v786, %v814
        %v995 = vadd.f32 %v787, %v818
        %v996 = vadd.f32 %v788, %v822
        %v997 = vadd.f32 %v789, %v814
        %v998 = vadd.f32 %v790, %v818
        %v999 = vadd.f32 %v791, %v822
        %v1000 = vadd.f32 %v792, %v814
        %v1001 = vadd.f32 %v793, %v818
        %v1002 = vadd.f32 %v794, %v822
        %v1003 = vadd.f32 %v795, %v814
        %v1004 = vadd.f32 %v796, %v818
        %v1005 = vadd.f32 %v797, %v822
        %v1006 = vadd.f32 %v798, %v814
        %v1007 = vadd.f32 %v799, %v818
        %v1008 = vadd.f32 %v800, %v822
        %v1009 = vadd.f32 %v801, %v814
        %v1010 = vadd.f32 %v802, %v818
        %v1011 = vadd.f32 %v803, %v822
        %v1012 = vadd.f32 %v804, %v814
        %v1013 = vadd.f32 %v805, %v818
        %v1014 = vadd.f32 %v806, %v822
        %v1015 = vadd.f32 %v807, %v814
        %v1016 = vadd.f32 %v808, %v818
        %v1017 = vadd.f32 %v809, %v822
        %1018 = vset.pattern.permute.xlu0 1
        %1019 = vperm.xlu0 %1018, %v205
        %v1020 = vpop.permute.xlu0 %1019
        %1022 = vset.pattern.permute.xlu0 1
        %1023 = vperm.xlu0 %1022, %v206
        %v1024 = vpop.permute.xlu0 %1023
        %1026 = vset.pattern.permute.xlu0 1
        %1027 = vperm.xlu0 %1026, %v207
        %v1028 = vpop.permute.xlu0 %1027
        %1030 = vset.pattern.permute.xlu0 1
        %1031 = vperm.xlu0 %1030, %v208
        %v1032 = vpop.permute.xlu0 %1031
        %1034 = vset.pattern.permute.xlu0 1
        %1035 = vperm.xlu0 %1034, %v209
        %v1036 = vpop.permute.xlu0 %1035
        %1038 = vset.pattern.permute.xlu0 1
        %1039 = vperm.xlu0 %1038, %v210
        %v1040 = vpop.permute.xlu0 %1039
        %1042 = vset.pattern.permute.xlu0 1
        %1043 = vperm.xlu0 %1042, %v211
        %v1044 = vpop.permute.xlu0 %1043
        %1046 = vset.pattern.permute.xlu0 1
        %1047 = vperm.xlu0 %1046, %v212
        %v1048 = vpop.permute.xlu0 %1047
        %1050 = vset.pattern.permute.xlu0 1
        %1051 = vperm.xlu0 %1050, %v213
        %v1052 = vpop.permute.xlu0 %1051
        %1054 = vset.pattern.permute.xlu0 1
        %1055 = vperm.xlu0 %1054, %v214
        %v1056 = vpop.permute.xlu0 %1055
        %1058 = vset.pattern.permute.xlu0 1
        %1059 = vperm.xlu0 %1058, %v215
        %v1060 = vpop.permute.xlu0 %1059
        %1062 = vset.pattern.permute.xlu0 1
        %1063 = vperm.xlu0 %1062, %v216
        %v1064 = vpop.permute.xlu0 %1063
        %1066 = vset.pattern.permute.xlu0 1
        %1067 = vperm.xlu0 %1066, %v217
        %v1068 = vpop.permute.xlu0 %1067
        %1070 = vset.pattern.permute.xlu0 1
        %1071 = vperm.xlu0 %1070, %v218
        %v1072 = vpop.permute.xlu0 %1071
        %1074 = vset.pattern.permute.xlu0 1
        %1075 = vperm.xlu0 %1074, %v219
        %v1076 = vpop.permute.xlu0 %1075
        %1078 = vset.pattern.permute.xlu0 1
        %1079 = vperm.xlu0 %1078, %v220
        %v1080 = vpop.permute.xlu0 %1079
        %1082 = vset.pattern.permute.xlu0 1
        %1083 = vperm.xlu0 %1082, %v221
        %v1084 = vpop.permute.xlu0 %1083
        %1086 = vset.pattern.permute.xlu0 1
        %1087 = vperm.xlu0 %1086, %v222
        %v1088 = vpop.permute.xlu0 %1087
        %1090 = vset.pattern.permute.xlu0 1
        %1091 = vperm.xlu0 %1090, %v223
        %v1092 = vpop.permute.xlu0 %1091
        %1094 = vset.pattern.permute.xlu0 1
        %1095 = vperm.xlu0 %1094, %v224
        %v1096 = vpop.permute.xlu0 %1095
        %1098 = vset.pattern.permute.xlu0 1
        %1099 = vperm.xlu0 %1098, %v225
        %v1100 = vpop.permute.xlu0 %1099
        %1102 = vset.pattern.permute.xlu0 1
        %1103 = vperm.xlu0 %1102, %v226
        %v1104 = vpop.permute.xlu0 %1103
        %1106 = vset.pattern.permute.xlu0 1
        %1107 = vperm.xlu0 %1106, %v227
        %v1108 = vpop.permute.xlu0 %1107
        %1110 = vset.pattern.permute.xlu0 1
        %1111 = vperm.xlu0 %1110, %v228
        %v1112 = vpop.permute.xlu0 %1111
        %1114 = vset.pattern.permute.xlu0 1
        %1115 = vperm.xlu0 %1114, %v229
        %v1116 = vpop.permute.xlu0 %1115
        %1118 = vset.pattern.permute.xlu0 1
        %1119 = vperm.xlu0 %1118, %v230
        %v1120 = vpop.permute.xlu0 %1119
        %1122 = vset.pattern.permute.xlu0 1
        %1123 = vperm.xlu0 %1122, %v231
        %v1124 = vpop.permute.xlu0 %1123
        %1126 = vset.pattern.permute.xlu0 1
        %1127 = vperm.xlu0 %1126, %v232
        %v1128 = vpop.permute.xlu0 %1127
        %1130 = vset.pattern.permute.xlu0 1
        %1131 = vperm.xlu0 %1130, %v233
        %v1132 = vpop.permute.xlu0 %1131
        %1134 = vset.pattern.permute.xlu0 1
        %1135 = vperm.xlu0 %1134, %v234
        %v1136 = vpop.permute.xlu0 %1135
        %1138 = vset.pattern.permute.xlu0 1
        %1139 = vperm.xlu0 %1138, %v235
        %v1140 = vpop.permute.xlu0 %1139
        %1142 = vset.pattern.permute.xlu0 1
        %1143 = vperm.xlu0 %1142, %v236
        %v1144 = vpop.permute.xlu0 %1143
        %1146 = vset.pattern.permute.xlu0 1
        %1147 = vperm.xlu0 %1146, %v237
        %v1148 = vpop.permute.xlu0 %1147
        %1150 = vset.pattern.permute.xlu0 1
        %1151 = vperm.xlu0 %1150, %v238
        %v1152 = vpop.permute.xlu0 %1151
        %1154 = vset.pattern.permute.xlu0 1
        %1155 = vperm.xlu0 %1154, %v239
        %v1156 = vpop.permute.xlu0 %1155
        %1158 = vset.pattern.permute.xlu0 1
        %1159 = vperm.xlu0 %1158, %v240
        %v1160 = vpop.permute.xlu0 %1159
        %1162 = vset.pattern.permute.xlu0 1
        %1163 = vperm.xlu0 %1162, %v241
        %v1164 = vpop.permute.xlu0 %1163
        %1166 = vset.pattern.permute.xlu0 1
        %1167 = vperm.xlu0 %1166, %v242
        %v1168 = vpop.permute.xlu0 %1167
        %1170 = vset.pattern.permute.xlu0 1
        %1171 = vperm.xlu0 %1170, %v243
        %v1172 = vpop.permute.xlu0 %1171
        %1174 = vset.pattern.permute.xlu0 1
        %1175 = vperm.xlu0 %1174, %v244
        %v1176 = vpop.permute.xlu0 %1175
        %1178 = vset.pattern.permute.xlu0 1
        %1179 = vperm.xlu0 %1178, %v245
        %v1180 = vpop.permute.xlu0 %1179
        %1182 = vset.pattern.permute.xlu0 1
        %1183 = vperm.xlu0 %1182, %v246
        %v1184 = vpop.permute.xlu0 %1183
        %1186 = vset.pattern.permute.xlu0 1
        %1187 = vperm.xlu0 %1186, %v247
        %v1188 = vpop.permute.xlu0 %1187
        %1190 = vset.pattern.permute.xlu0 1
        %1191 = vperm.xlu0 %1190, %v248
        %v1192 = vpop.permute.xlu0 %1191
        %1194 = vset.pattern.permute.xlu0 1
        %1195 = vperm.xlu0 %1194, %v249
        %v1196 = vpop.permute.xlu0 %1195
        %1198 = vset.pattern.permute.xlu0 1
        %1199 = vperm.xlu0 %1198, %v250
        %v1200 = vpop.permute.xlu0 %1199
        %1202 = vset.pattern.permute.xlu0 1
        %1203 = vperm.xlu0 %1202, %v251
        %v1204 = vpop.permute.xlu0 %1203
        %1206 = vset.pattern.permute.xlu0 1
        %1207 = vperm.xlu0 %1206, %v252
        %v1208 = vpop.permute.xlu0 %1207
        %1210 = vset.pattern.permute.xlu0 1
        %1211 = vperm.xlu0 %1210, %v253
        %v1212 = vpop.permute.xlu0 %1211
        %1214 = vset.pattern.permute.xlu0 1
        %1215 = vperm.xlu0 %1214, %v254
        %v1216 = vpop.permute.xlu0 %1215
        %1218 = vset.pattern.permute.xlu0 1
        %1219 = vperm.xlu0 %1218, %v255
        %v1220 = vpop.permute.xlu0 %1219
        %1222 = vset.pattern.permute.xlu0 1
        %1223 = vperm.xlu0 %1222, %v256
        %v1224 = vpop.permute.xlu0 %1223
        %1226 = vset.pattern.permute.xlu0 1
        %1227 = vperm.xlu0 %1226, %v257
        %v1228 = vpop.permute.xlu0 %1227
        %1230 = vset.pattern.permute.xlu0 1
        %1231 = vperm.xlu0 %1230, %v258
        %v1232 = vpop.permute.xlu0 %1231
        %1234 = vset.pattern.permute.xlu0 1
        %1235 = vperm.xlu0 %1234, %v259
        %v1236 = vpop.permute.xlu0 %1235
        %1238 = vset.pattern.permute.xlu0 1
        %1239 = vperm.xlu0 %1238, %v260
        %v1240 = vpop.permute.xlu0 %1239
        %1242 = vset.pattern.permute.xlu0 1
        %1243 = vperm.xlu0 %1242, %v261
        %v1244 = vpop.permute.xlu0 %1243
        %1246 = vset.pattern.permute.xlu0 1
        %1247 = vperm.xlu0 %1246, %v262
        %v1248 = vpop.permute.xlu0 %1247
        %1250 = vset.pattern.permute.xlu0 1
        %1251 = vperm.xlu0 %1250, %v263
        %v1252 = vpop.permute.xlu0 %1251
        %1254 = vset.pattern.permute.xlu0 1
        %1255 = vperm.xlu0 %1254, %v264
        %v1256 = vpop.permute.xlu0 %1255
        %1258 = vset.pattern.permute.xlu0 1
        %1259 = vperm.xlu0 %1258, %v265
        %v1260 = vpop.permute.xlu0 %1259
        %1262 = vset.pattern.permute.xlu0 1
        %1263 = vperm.xlu0 %1262, %v266
        %v1264 = vpop.permute.xlu0 %1263
        %1266 = vset.pattern.permute.xlu0 1
        %1267 = vperm.xlu0 %1266, %v267
        %v1268 = vpop.permute.xlu0 %1267
        %1270 = vset.pattern.permute.xlu0 1
        %1271 = vperm.xlu0 %1270, %v268
        %v1272 = vpop.permute.xlu0 %1271
        %v1274 = vlaneseq
        %v1275 = vshrl.u32 %v1274, 7
        %v1276 = vsub.s32 1, %v1275
        %v1277 = vrot.slane %v202, %v1276
        %v1278 = vlaneseq
        %v1279 = vshrl.u32 %v1278, 7
        %v1280 = vsub.s32 5, %v1279
        %v1281 = vrot.slane %v202, %v1280
        %v1282 = vlaneseq
        %v1283 = vshrl.u32 %v1282, 7
        %v1284 = vsub.s32 1, %v1283
        %v1285 = vrot.slane %v203, %v1284
        %v1289 = vlaneseq
        %v1290 = vshrl.u32 %v1289, 7
        %v1291 = vsub.s32 1, %v1290
        %v1292 = vrot.slane %v1277, %v1291
        %v1293 = vlaneseq
        %v1294 = vshrl.u32 %v1293, 7
        %v1295 = vsub.s32 1, %v1294
        %v1296 = vrot.slane %v1281, %v1295
        %v1297 = vlaneseq
        %v1298 = vshrl.u32 %v1297, 7
        %v1299 = vsub.s32 1, %v1298
        %v1300 = vrot.slane %v1285, %v1299
        %v1301 = vmul.f32 %v1020, %v1292
        %v1302 = vmul.f32 %v1020, %v1296
        %v1303 = vmul.f32 %v1020, %v1300
        %v1304 = vmul.f32 %v1024, %v1292
        %v1305 = vmul.f32 %v1024, %v1296
        %v1306 = vmul.f32 %v1024, %v1300
        %v1307 = vmul.f32 %v1028, %v1292
        %v1308 = vmul.f32 %v1028, %v1296
        %v1309 = vmul.f32 %v1028, %v1300
        %v1310 = vmul.f32 %v1032, %v1292
        %v1311 = vmul.f32 %v1032, %v1296
        %v1312 = vmul.f32 %v1032, %v1300
        %v1313 = vmul.f32 %v1036, %v1292
        %v1314 = vmul.f32 %v1036, %v1296
        %v1315 = vmul.f32 %v1036, %v1300
        %v1316 = vmul.f32 %v1040, %v1292
        %v1317 = vmul.f32 %v1040, %v1296
        %v1318 = vmul.f32 %v1040, %v1300
        %v1319 = vmul.f32 %v1044, %v1292
        %v1320 = vmul.f32 %v1044, %v1296
        %v1321 = vmul.f32 %v1044, %v1300
        %v1322 = vmul.f32 %v1048, %v1292
        %v1323 = vmul.f32 %v1048, %v1296
        %v1324 = vmul.f32 %v1048, %v1300
        %v1325 = vmul.f32 %v1052, %v1292
        %v1326 = vmul.f32 %v1052, %v1296
        %v1327 = vmul.f32 %v1052, %v1300
        %v1328 = vmul.f32 %v1056, %v1292
        %v1329 = vmul.f32 %v1056, %v1296
        %v1330 = vmul.f32 %v1056, %v1300
        %v1331 = vmul.f32 %v1060, %v1292
        %v1332 = vmul.f32 %v1060, %v1296
        %v1333 = vmul.f32 %v1060, %v1300
        %v1334 = vmul.f32 %v1064, %v1292
        %v1335 = vmul.f32 %v1064, %v1296
        %v1336 = vmul.f32 %v1064, %v1300
        %v1337 = vmul.f32 %v1068, %v1292
        %v1338 = vmul.f32 %v1068, %v1296
        %v1339 = vmul.f32 %v1068, %v1300
        %v1340 = vmul.f32 %v1072, %v1292
        %v1341 = vmul.f32 %v1072, %v1296
        %v1342 = vmul.f32 %v1072, %v1300
        %v1343 = vmul.f32 %v1076, %v1292
        %v1344 = vmul.f32 %v1076, %v1296
        %v1345 = vmul.f32 %v1076, %v1300
        %v1346 = vmul.f32 %v1080, %v1292
        %v1347 = vmul.f32 %v1080, %v1296
        %v1348 = vmul.f32 %v1080, %v1300
        %v1349 = vmul.f32 %v1084, %v1292
        %v1350 = vmul.f32 %v1084, %v1296
        %v1351 = vmul.f32 %v1084, %v1300
        %v1352 = vmul.f32 %v1088, %v1292
        %v1353 = vmul.f32 %v1088, %v1296
        %v1354 = vmul.f32 %v1088, %v1300
        %v1355 = vmul.f32 %v1092, %v1292
        %v1356 = vmul.f32 %v1092, %v1296
        %v1357 = vmul.f32 %v1092, %v1300
        %v1358 = vmul.f32 %v1096, %v1292
        %v1359 = vmul.f32 %v1096, %v1296
        %v1360 = vmul.f32 %v1096, %v1300
        %v1361 = vmul.f32 %v1100, %v1292
        %v1362 = vmul.f32 %v1100, %v1296
        %v1363 = vmul.f32 %v1100, %v1300
        %v1364 = vmul.f32 %v1104, %v1292
        %v1365 = vmul.f32 %v1104, %v1296
        %v1366 = vmul.f32 %v1104, %v1300
        %v1367 = vmul.f32 %v1108, %v1292
        %v1368 = vmul.f32 %v1108, %v1296
        %v1369 = vmul.f32 %v1108, %v1300
        %v1370 = vmul.f32 %v1112, %v1292
        %v1371 = vmul.f32 %v1112, %v1296
        %v1372 = vmul.f32 %v1112, %v1300
        %v1373 = vmul.f32 %v1116, %v1292
        %v1374 = vmul.f32 %v1116, %v1296
        %v1375 = vmul.f32 %v1116, %v1300
        %v1376 = vmul.f32 %v1120, %v1292
        %v1377 = vmul.f32 %v1120, %v1296
        %v1378 = vmul.f32 %v1120, %v1300
        %v1379 = vmul.f32 %v1124, %v1292
        %v1380 = vmul.f32 %v1124, %v1296
        %v1381 = vmul.f32 %v1124, %v1300
        %v1382 = vmul.f32 %v1128, %v1292
        %v1383 = vmul.f32 %v1128, %v1296
        %v1384 = vmul.f32 %v1128, %v1300
        %v1385 = vmul.f32 %v1132, %v1292
        %v1386 = vmul.f32 %v1132, %v1296
        %v1387 = vmul.f32 %v1132, %v1300
        %v1388 = vmul.f32 %v1136, %v1292
        %v1389 = vmul.f32 %v1136, %v1296
        %v1390 = vmul.f32 %v1136, %v1300
        %v1391 = vmul.f32 %v1140, %v1292
        %v1392 = vmul.f32 %v1140, %v1296
        %v1393 = vmul.f32 %v1140, %v1300
        %v1394 = vmul.f32 %v1144, %v1292
        %v1395 = vmul.f32 %v1144, %v1296
        %v1396 = vmul.f32 %v1144, %v1300
        %v1397 = vmul.f32 %v1148, %v1292
        %v1398 = vmul.f32 %v1148, %v1296
        %v1399 = vmul.f32 %v1148, %v1300
        %v1400 = vmul.f32 %v1152, %v1292
        %v1401 = vmul.f32 %v1152, %v1296
        %v1402 = vmul.f32 %v1152, %v1300
        %v1403 = vmul.f32 %v1156, %v1292
        %v1404 = vmul.f32 %v1156, %v1296
        %v1405 = vmul.f32 %v1156, %v1300
        %v1406 = vmul.f32 %v1160, %v1292
        %v1407 = vmul.f32 %v1160, %v1296
        %v1408 = vmul.f32 %v1160, %v1300
        %v1409 = vmul.f32 %v1164, %v1292
        %v1410 = vmul.f32 %v1164, %v1296
        %v1411 = vmul.f32 %v1164, %v1300
        %v1412 = vmul.f32 %v1168, %v1292
        %v1413 = vmul.f32 %v1168, %v1296
        %v1414 = vmul.f32 %v1168, %v1300
        %v1415 = vmul.f32 %v1172, %v1292
        %v1416 = vmul.f32 %v1172, %v1296
        %v1417 = vmul.f32 %v1172, %v1300
        %v1418 = vmul.f32 %v1176, %v1292
        %v1419 = vmul.f32 %v1176, %v1296
        %v1420 = vmul.f32 %v1176, %v1300
        %v1421 = vmul.f32 %v1180, %v1292
        %v1422 = vmul.f32 %v1180, %v1296
        %v1423 = vmul.f32 %v1180, %v1300
        %v1424 = vmul.f32 %v1184, %v1292
        %v1425 = vmul.f32 %v1184, %v1296
        %v1426 = vmul.f32 %v1184, %v1300
        %v1427 = vmul.f32 %v1188, %v1292
        %v1428 = vmul.f32 %v1188, %v1296
        %v1429 = vmul.f32 %v1188, %v1300
        %v1430 = vmul.f32 %v1192, %v1292
        %v1431 = vmul.f32 %v1192, %v1296
        %v1432 = vmul.f32 %v1192, %v1300
        %v1433 = vmul.f32 %v1196, %v1292
        %v1434 = vmul.f32 %v1196, %v1296
        %v1435 = vmul.f32 %v1196, %v1300
        %v1436 = vmul.f32 %v1200, %v1292
        %v1437 = vmul.f32 %v1200, %v1296
        %v1438 = vmul.f32 %v1200, %v1300
        %v1439 = vmul.f32 %v1204, %v1292
        %v1440 = vmul.f32 %v1204, %v1296
        %v1441 = vmul.f32 %v1204, %v1300
        %v1442 = vmul.f32 %v1208, %v1292
        %v1443 = vmul.f32 %v1208, %v1296
        %v1444 = vmul.f32 %v1208, %v1300
        %v1445 = vmul.f32 %v1212, %v1292
        %v1446 = vmul.f32 %v1212, %v1296
        %v1447 = vmul.f32 %v1212, %v1300
        %v1448 = vmul.f32 %v1216, %v1292
        %v1449 = vmul.f32 %v1216, %v1296
        %v1450 = vmul.f32 %v1216, %v1300
        %v1451 = vmul.f32 %v1220, %v1292
        %v1452 = vmul.f32 %v1220, %v1296
        %v1453 = vmul.f32 %v1220, %v1300
        %v1454 = vmul.f32 %v1224, %v1292
        %v1455 = vmul.f32 %v1224, %v1296
        %v1456 = vmul.f32 %v1224, %v1300
        %v1457 = vmul.f32 %v1228, %v1292
        %v1458 = vmul.f32 %v1228, %v1296
        %v1459 = vmul.f32 %v1228, %v1300
        %v1460 = vmul.f32 %v1232, %v1292
        %v1461 = vmul.f32 %v1232, %v1296
        %v1462 = vmul.f32 %v1232, %v1300
        %v1463 = vmul.f32 %v1236, %v1292
        %v1464 = vmul.f32 %v1236, %v1296
        %v1465 = vmul.f32 %v1236, %v1300
        %v1466 = vmul.f32 %v1240, %v1292
        %v1467 = vmul.f32 %v1240, %v1296
        %v1468 = vmul.f32 %v1240, %v1300
        %v1469 = vmul.f32 %v1244, %v1292
        %v1470 = vmul.f32 %v1244, %v1296
        %v1471 = vmul.f32 %v1244, %v1300
        %v1472 = vmul.f32 %v1248, %v1292
        %v1473 = vmul.f32 %v1248, %v1296
        %v1474 = vmul.f32 %v1248, %v1300
        %v1475 = vmul.f32 %v1252, %v1292
        %v1476 = vmul.f32 %v1252, %v1296
        %v1477 = vmul.f32 %v1252, %v1300
        %v1478 = vmul.f32 %v1256, %v1292
        %v1479 = vmul.f32 %v1256, %v1296
        %v1480 = vmul.f32 %v1256, %v1300
        %v1481 = vmul.f32 %v1260, %v1292
        %v1482 = vmul.f32 %v1260, %v1296
        %v1483 = vmul.f32 %v1260, %v1300
        %v1484 = vmul.f32 %v1264, %v1292
        %v1485 = vmul.f32 %v1264, %v1296
        %v1486 = vmul.f32 %v1264, %v1300
        %v1487 = vmul.f32 %v1268, %v1292
        %v1488 = vmul.f32 %v1268, %v1296
        %v1489 = vmul.f32 %v1268, %v1300
        %v1490 = vmul.f32 %v1272, %v1292
        %v1491 = vmul.f32 %v1272, %v1296
        %v1492 = vmul.f32 %v1272, %v1300
        %v1493 = vadd.f32 %v826, %v1301
        %v1494 = vadd.f32 %v827, %v1302
        %v1495 = vadd.f32 %v828, %v1303
        %v1496 = vadd.f32 %v829, %v1304
        %v1497 = vadd.f32 %v830, %v1305
        %v1498 = vadd.f32 %v831, %v1306
        %v1499 = vadd.f32 %v832, %v1307
        %v1500 = vadd.f32 %v833, %v1308
        %v1501 = vadd.f32 %v834, %v1309
        %v1502 = vadd.f32 %v835, %v1310
        %v1503 = vadd.f32 %v836, %v1311
        %v1504 = vadd.f32 %v837, %v1312
        %v1505 = vadd.f32 %v838, %v1313
        %v1506 = vadd.f32 %v839, %v1314
        %v1507 = vadd.f32 %v840, %v1315
        %v1508 = vadd.f32 %v841, %v1316
        %v1509 = vadd.f32 %v842, %v1317
        %v1510 = vadd.f32 %v843, %v1318
        %v1511 = vadd.f32 %v844, %v1319
        %v1512 = vadd.f32 %v845, %v1320
        %v1513 = vadd.f32 %v846, %v1321
        %v1514 = vadd.f32 %v847, %v1322
        %v1515 = vadd.f32 %v848, %v1323
        %v1516 = vadd.f32 %v849, %v1324
        %v1517 = vadd.f32 %v850, %v1325
        %v1518 = vadd.f32 %v851, %v1326
        %v1519 = vadd.f32 %v852, %v1327
        %v1520 = vadd.f32 %v853, %v1328
        %v1521 = vadd.f32 %v854, %v1329
        %v1522 = vadd.f32 %v855, %v1330
        %v1523 = vadd.f32 %v856, %v1331
        %v1524 = vadd.f32 %v857, %v1332
        %v1525 = vadd.f32 %v858, %v1333
        %v1526 = vadd.f32 %v859, %v1334
        %v1527 = vadd.f32 %v860, %v1335
        %v1528 = vadd.f32 %v861, %v1336
        %v1529 = vadd.f32 %v862, %v1337
        %v1530 = vadd.f32 %v863, %v1338
        %v1531 = vadd.f32 %v864, %v1339
        %v1532 = vadd.f32 %v865, %v1340
        %v1533 = vadd.f32 %v866, %v1341
        %v1534 = vadd.f32 %v867, %v1342
        %v1535 = vadd.f32 %v868, %v1343
        %v1536 = vadd.f32 %v869, %v1344
        %v1537 = vadd.f32 %v870, %v1345
        %v1538 = vadd.f32 %v871, %v1346
        %v1539 = vadd.f32 %v872, %v1347
        %v1540 = vadd.f32 %v873, %v1348
        %v1541 = vadd.f32 %v874, %v1349
        %v1542 = vadd.f32 %v875, %v1350
        %v1543 = vadd.f32 %v876, %v1351
        %v1544 = vadd.f32 %v877, %v1352
        %v1545 = vadd.f32 %v878, %v1353
        %v1546 = vadd.f32 %v879, %v1354
        %v1547 = vadd.f32 %v880, %v1355
        %v1548 = vadd.f32 %v881, %v1356
        %v1549 = vadd.f32 %v882, %v1357
        %v1550 = vadd.f32 %v883, %v1358
        %v1551 = vadd.f32 %v884, %v1359
        %v1552 = vadd.f32 %v885, %v1360
        %v1553 = vadd.f32 %v886, %v1361
        %v1554 = vadd.f32 %v887, %v1362
        %v1555 = vadd.f32 %v888, %v1363
        %v1556 = vadd.f32 %v889, %v1364
        %v1557 = vadd.f32 %v890, %v1365
        %v1558 = vadd.f32 %v891, %v1366
        %v1559 = vadd.f32 %v892, %v1367
        %v1560 = vadd.f32 %v893, %v1368
        %v1561 = vadd.f32 %v894, %v1369
        %v1562 = vadd.f32 %v895, %v1370
        %v1563 = vadd.f32 %v896, %v1371
        %v1564 = vadd.f32 %v897, %v1372
        %v1565 = vadd.f32 %v898, %v1373
        %v1566 = vadd.f32 %v899, %v1374
        %v1567 = vadd.f32 %v900, %v1375
        %v1568 = vadd.f32 %v901, %v1376
        %v1569 = vadd.f32 %v902, %v1377
        %v1570 = vadd.f32 %v903, %v1378
        %v1571 = vadd.f32 %v904, %v1379
        %v1572 = vadd.f32 %v905, %v1380
        %v1573 = vadd.f32 %v906, %v1381
        %v1574 = vadd.f32 %v907, %v1382
        %v1575 = vadd.f32 %v908, %v1383
        %v1576 = vadd.f32 %v909, %v1384
        %v1577 = vadd.f32 %v910, %v1385
        %v1578 = vadd.f32 %v911, %v1386
        %v1579 = vadd.f32 %v912, %v1387
        %v1580 = vadd.f32 %v913, %v1388
        %v1581 = vadd.f32 %v914, %v1389
        %v1582 = vadd.f32 %v915, %v1390
        %v1583 = vadd.f32 %v916, %v1391
        %v1584 = vadd.f32 %v917, %v1392
        %v1585 = vadd.f32 %v918, %v1393
        %v1586 = vadd.f32 %v919, %v1394
        %v1587 = vadd.f32 %v920, %v1395
        %v1588 = vadd.f32 %v921, %v1396
        %v1589 = vadd.f32 %v922, %v1397
        %v1590 = vadd.f32 %v923, %v1398
        %v1591 = vadd.f32 %v924, %v1399
        %v1592 = vadd.f32 %v925, %v1400
        %v1593 = vadd.f32 %v926, %v1401
        %v1594 = vadd.f32 %v927, %v1402
        %v1595 = vadd.f32 %v928, %v1403
        %v1596 = vadd.f32 %v929, %v1404
        %v1597 = vadd.f32 %v930, %v1405
        %v1598 = vadd.f32 %v931, %v1406
        %v1599 = vadd.f32 %v932, %v1407
        %v1600 = vadd.f32 %v933, %v1408
        %v1601 = vadd.f32 %v934, %v1409
        %v1602 = vadd.f32 %v935, %v1410
        %v1603 = vadd.f32 %v936, %v1411
        %v1604 = vadd.f32 %v937, %v1412
        %v1605 = vadd.f32 %v938, %v1413
        %v1606 = vadd.f32 %v939, %v1414
        %v1607 = vadd.f32 %v940, %v1415
        %v1608 = vadd.f32 %v941, %v1416
        %v1609 = vadd.f32 %v942, %v1417
        %v1610 = vadd.f32 %v943, %v1418
        %v1611 = vadd.f32 %v944, %v1419
        %v1612 = vadd.f32 %v945, %v1420
        %v1613 = vadd.f32 %v946, %v1421
        %v1614 = vadd.f32 %v947, %v1422
        %v1615 = vadd.f32 %v948, %v1423
        %v1616 = vadd.f32 %v949, %v1424
        %v1617 = vadd.f32 %v950, %v1425
        %v1618 = vadd.f32 %v951, %v1426
        %v1619 = vadd.f32 %v952, %v1427
        %v1620 = vadd.f32 %v953, %v1428
        %v1621 = vadd.f32 %v954, %v1429
        %v1622 = vadd.f32 %v955, %v1430
        %v1623 = vadd.f32 %v956, %v1431
        %v1624 = vadd.f32 %v957, %v1432
        %v1625 = vadd.f32 %v958, %v1433
        %v1626 = vadd.f32 %v959, %v1434
        %v1627 = vadd.f32 %v960, %v1435
        %v1628 = vadd.f32 %v961, %v1436
        %v1629 = vadd.f32 %v962, %v1437
        %v1630 = vadd.f32 %v963, %v1438
        %v1631 = vadd.f32 %v964, %v1439
        %v1632 = vadd.f32 %v965, %v1440
        %v1633 = vadd.f32 %v966, %v1441
        %v1634 = vadd.f32 %v967, %v1442
        %v1635 = vadd.f32 %v968, %v1443
        %v1636 = vadd.f32 %v969, %v1444
        %v1637 = vadd.f32 %v970, %v1445
        %v1638 = vadd.f32 %v971, %v1446
        %v1639 = vadd.f32 %v972, %v1447
        %v1640 = vadd.f32 %v973, %v1448
        %v1641 = vadd.f32 %v974, %v1449
        %v1642 = vadd.f32 %v975, %v1450
        %v1643 = vadd.f32 %v976, %v1451
        %v1644 = vadd.f32 %v977, %v1452
        %v1645 = vadd.f32 %v978, %v1453
        %v1646 = vadd.f32 %v979, %v1454
        %v1647 = vadd.f32 %v980, %v1455
        %v1648 = vadd.f32 %v981, %v1456
        %v1649 = vadd.f32 %v982, %v1457
        %v1650 = vadd.f32 %v983, %v1458
        %v1651 = vadd.f32 %v984, %v1459
        %v1652 = vadd.f32 %v985, %v1460
        %v1653 = vadd.f32 %v986, %v1461
        %v1654 = vadd.f32 %v987, %v1462
        %v1655 = vadd.f32 %v988, %v1463
        %v1656 = vadd.f32 %v989, %v1464
        %v1657 = vadd.f32 %v990, %v1465
        %v1658 = vadd.f32 %v991, %v1466
        %v1659 = vadd.f32 %v992, %v1467
        %v1660 = vadd.f32 %v993, %v1468
        %v1661 = vadd.f32 %v994, %v1469
        %v1662 = vadd.f32 %v995, %v1470
        %v1663 = vadd.f32 %v996, %v1471
        %v1664 = vadd.f32 %v997, %v1472
        %v1665 = vadd.f32 %v998, %v1473
        %v1666 = vadd.f32 %v999, %v1474
        %v1667 = vadd.f32 %v1000, %v1475
        %v1668 = vadd.f32 %v1001, %v1476
        %v1669 = vadd.f32 %v1002, %v1477
        %v1670 = vadd.f32 %v1003, %v1478
        %v1671 = vadd.f32 %v1004, %v1479
        %v1672 = vadd.f32 %v1005, %v1480
        %v1673 = vadd.f32 %v1006, %v1481
        %v1674 = vadd.f32 %v1007, %v1482
        %v1675 = vadd.f32 %v1008, %v1483
        %v1676 = vadd.f32 %v1009, %v1484
        %v1677 = vadd.f32 %v1010, %v1485
        %v1678 = vadd.f32 %v1011, %v1486
        %v1679 = vadd.f32 %v1012, %v1487
        %v1680 = vadd.f32 %v1013, %v1488
        %v1681 = vadd.f32 %v1014, %v1489
        %v1682 = vadd.f32 %v1015, %v1490
        %v1683 = vadd.f32 %v1016, %v1491
        %v1684 = vadd.f32 %v1017, %v1492
        %1685 = vset.pattern.permute.xlu0 2
        %1686 = vperm.xlu0 %1685, %v205
        %v1687 = vpop.permute.xlu0 %1686
        %1689 = vset.pattern.permute.xlu0 2
        %1690 = vperm.xlu0 %1689, %v206
        %v1691 = vpop.permute.xlu0 %1690
        %1693 = vset.pattern.permute.xlu0 2
        %1694 = vperm.xlu0 %1693, %v207
        %v1695 = vpop.permute.xlu0 %1694
        %1697 = vset.pattern.permute.xlu0 2
        %1698 = vperm.xlu0 %1697, %v208
        %v1699 = vpop.permute.xlu0 %1698
        %1701 = vset.pattern.permute.xlu0 2
        %1702 = vperm.xlu0 %1701, %v209
        %v1703 = vpop.permute.xlu0 %1702
        %1705 = vset.pattern.permute.xlu0 2
        %1706 = vperm.xlu0 %1705, %v210
        %v1707 = vpop.permute.xlu0 %1706
        %1709 = vset.pattern.permute.xlu0 2
        %1710 = vperm.xlu0 %1709, %v211
        %v1711 = vpop.permute.xlu0 %1710
        %1713 = vset.pattern.permute.xlu0 2
        %1714 = vperm.xlu0 %1713, %v212
        %v1715 = vpop.permute.xlu0 %1714
        %1717 = vset.pattern.permute.xlu0 2
        %1718 = vperm.xlu0 %1717, %v213
        %v1719 = vpop.permute.xlu0 %1718
        %1721 = vset.pattern.permute.xlu0 2
        %1722 = vperm.xlu0 %1721, %v214
        %v1723 = vpop.permute.xlu0 %1722
        %1725 = vset.pattern.permute.xlu0 2
        %1726 = vperm.xlu0 %1725, %v215
        %v1727 = vpop.permute.xlu0 %1726
        %1729 = vset.pattern.permute.xlu0 2
        %1730 = vperm.xlu0 %1729, %v216
        %v1731 = vpop.permute.xlu0 %1730
        %1733 = vset.pattern.permute.xlu0 2
        %1734 = vperm.xlu0 %1733, %v217
        %v1735 = vpop.permute.xlu0 %1734
        %1737 = vset.pattern.permute.xlu0 2
        %1738 = vperm.xlu0 %1737, %v218
        %v1739 = vpop.permute.xlu0 %1738
        %1741 = vset.pattern.permute.xlu0 2
        %1742 = vperm.xlu0 %1741, %v219
        %v1743 = vpop.permute.xlu0 %1742
        %1745 = vset.pattern.permute.xlu0 2
        %1746 = vperm.xlu0 %1745, %v220
        %v1747 = vpop.permute.xlu0 %1746
        %1749 = vset.pattern.permute.xlu0 2
        %1750 = vperm.xlu0 %1749, %v221
        %v1751 = vpop.permute.xlu0 %1750
        %1753 = vset.pattern.permute.xlu0 2
        %1754 = vperm.xlu0 %1753, %v222
        %v1755 = vpop.permute.xlu0 %1754
        %1757 = vset.pattern.permute.xlu0 2
        %1758 = vperm.xlu0 %1757, %v223
        %v1759 = vpop.permute.xlu0 %1758
        %1761 = vset.pattern.permute.xlu0 2
        %1762 = vperm.xlu0 %1761, %v224
        %v1763 = vpop.permute.xlu0 %1762
        %1765 = vset.pattern.permute.xlu0 2
        %1766 = vperm.xlu0 %1765, %v225
        %v1767 = vpop.permute.xlu0 %1766
        %1769 = vset.pattern.permute.xlu0 2
        %1770 = vperm.xlu0 %1769, %v226
        %v1771 = vpop.permute.xlu0 %1770
        %1773 = vset.pattern.permute.xlu0 2
        %1774 = vperm.xlu0 %1773, %v227
        %v1775 = vpop.permute.xlu0 %1774
        %1777 = vset.pattern.permute.xlu0 2
        %1778 = vperm.xlu0 %1777, %v228
        %v1779 = vpop.permute.xlu0 %1778
        %1781 = vset.pattern.permute.xlu0 2
        %1782 = vperm.xlu0 %1781, %v229
        %v1783 = vpop.permute.xlu0 %1782
        %1785 = vset.pattern.permute.xlu0 2
        %1786 = vperm.xlu0 %1785, %v230
        %v1787 = vpop.permute.xlu0 %1786
        %1789 = vset.pattern.permute.xlu0 2
        %1790 = vperm.xlu0 %1789, %v231
        %v1791 = vpop.permute.xlu0 %1790
        %1793 = vset.pattern.permute.xlu0 2
        %1794 = vperm.xlu0 %1793, %v232
        %v1795 = vpop.permute.xlu0 %1794
        %1797 = vset.pattern.permute.xlu0 2
        %1798 = vperm.xlu0 %1797, %v233
        %v1799 = vpop.permute.xlu0 %1798
        %1801 = vset.pattern.permute.xlu0 2
        %1802 = vperm.xlu0 %1801, %v234
        %v1803 = vpop.permute.xlu0 %1802
        %1805 = vset.pattern.permute.xlu0 2
        %1806 = vperm.xlu0 %1805, %v235
        %v1807 = vpop.permute.xlu0 %1806
        %1809 = vset.pattern.permute.xlu0 2
        %1810 = vperm.xlu0 %1809, %v236
        %v1811 = vpop.permute.xlu0 %1810
        %1813 = vset.pattern.permute.xlu0 2
        %1814 = vperm.xlu0 %1813, %v237
        %v1815 = vpop.permute.xlu0 %1814
        %1817 = vset.pattern.permute.xlu0 2
        %1818 = vperm.xlu0 %1817, %v238
        %v1819 = vpop.permute.xlu0 %1818
        %1821 = vset.pattern.permute.xlu0 2
        %1822 = vperm.xlu0 %1821, %v239
        %v1823 = vpop.permute.xlu0 %1822
        %1825 = vset.pattern.permute.xlu0 2
        %1826 = vperm.xlu0 %1825, %v240
        %v1827 = vpop.permute.xlu0 %1826
        %1829 = vset.pattern.permute.xlu0 2
        %1830 = vperm.xlu0 %1829, %v241
        %v1831 = vpop.permute.xlu0 %1830
        %1833 = vset.pattern.permute.xlu0 2
        %1834 = vperm.xlu0 %1833, %v242
        %v1835 = vpop.permute.xlu0 %1834
        %1837 = vset.pattern.permute.xlu0 2
        %1838 = vperm.xlu0 %1837, %v243
        %v1839 = vpop.permute.xlu0 %1838
        %1841 = vset.pattern.permute.xlu0 2
        %1842 = vperm.xlu0 %1841, %v244
        %v1843 = vpop.permute.xlu0 %1842
        %1845 = vset.pattern.permute.xlu0 2
        %1846 = vperm.xlu0 %1845, %v245
        %v1847 = vpop.permute.xlu0 %1846
        %1849 = vset.pattern.permute.xlu0 2
        %1850 = vperm.xlu0 %1849, %v246
        %v1851 = vpop.permute.xlu0 %1850
        %1853 = vset.pattern.permute.xlu0 2
        %1854 = vperm.xlu0 %1853, %v247
        %v1855 = vpop.permute.xlu0 %1854
        %1857 = vset.pattern.permute.xlu0 2
        %1858 = vperm.xlu0 %1857, %v248
        %v1859 = vpop.permute.xlu0 %1858
        %1861 = vset.pattern.permute.xlu0 2
        %1862 = vperm.xlu0 %1861, %v249
        %v1863 = vpop.permute.xlu0 %1862
        %1865 = vset.pattern.permute.xlu0 2
        %1866 = vperm.xlu0 %1865, %v250
        %v1867 = vpop.permute.xlu0 %1866
        %1869 = vset.pattern.permute.xlu0 2
        %1870 = vperm.xlu0 %1869, %v251
        %v1871 = vpop.permute.xlu0 %1870
        %1873 = vset.pattern.permute.xlu0 2
        %1874 = vperm.xlu0 %1873, %v252
        %v1875 = vpop.permute.xlu0 %1874
        %1877 = vset.pattern.permute.xlu0 2
        %1878 = vperm.xlu0 %1877, %v253
        %v1879 = vpop.permute.xlu0 %1878
        %1881 = vset.pattern.permute.xlu0 2
        %1882 = vperm.xlu0 %1881, %v254
        %v1883 = vpop.permute.xlu0 %1882
        %1885 = vset.pattern.permute.xlu0 2
        %1886 = vperm.xlu0 %1885, %v255
        %v1887 = vpop.permute.xlu0 %1886
        %1889 = vset.pattern.permute.xlu0 2
        %1890 = vperm.xlu0 %1889, %v256
        %v1891 = vpop.permute.xlu0 %1890
        %1893 = vset.pattern.permute.xlu0 2
        %1894 = vperm.xlu0 %1893, %v257
        %v1895 = vpop.permute.xlu0 %1894
        %1897 = vset.pattern.permute.xlu0 2
        %1898 = vperm.xlu0 %1897, %v258
        %v1899 = vpop.permute.xlu0 %1898
        %1901 = vset.pattern.permute.xlu0 2
        %1902 = vperm.xlu0 %1901, %v259
        %v1903 = vpop.permute.xlu0 %1902
        %1905 = vset.pattern.permute.xlu0 2
        %1906 = vperm.xlu0 %1905, %v260
        %v1907 = vpop.permute.xlu0 %1906
        %1909 = vset.pattern.permute.xlu0 2
        %1910 = vperm.xlu0 %1909, %v261
        %v1911 = vpop.permute.xlu0 %1910
        %1913 = vset.pattern.permute.xlu0 2
        %1914 = vperm.xlu0 %1913, %v262
        %v1915 = vpop.permute.xlu0 %1914
        %1917 = vset.pattern.permute.xlu0 2
        %1918 = vperm.xlu0 %1917, %v263
        %v1919 = vpop.permute.xlu0 %1918
        %1921 = vset.pattern.permute.xlu0 2
        %1922 = vperm.xlu0 %1921, %v264
        %v1923 = vpop.permute.xlu0 %1922
        %1925 = vset.pattern.permute.xlu0 2
        %1926 = vperm.xlu0 %1925, %v265
        %v1927 = vpop.permute.xlu0 %1926
        %1929 = vset.pattern.permute.xlu0 2
        %1930 = vperm.xlu0 %1929, %v266
        %v1931 = vpop.permute.xlu0 %1930
        %1933 = vset.pattern.permute.xlu0 2
        %1934 = vperm.xlu0 %1933, %v267
        %v1935 = vpop.permute.xlu0 %1934
        %1937 = vset.pattern.permute.xlu0 2
        %1938 = vperm.xlu0 %1937, %v268
        %v1939 = vpop.permute.xlu0 %1938
        %v1941 = vlaneseq
        %v1942 = vshrl.u32 %v1941, 7
        %v1943 = vsub.s32 2, %v1942
        %v1944 = vrot.slane %v202, %v1943
        %v1945 = vlaneseq
        %v1946 = vshrl.u32 %v1945, 7
        %v1947 = vsub.s32 6, %v1946
        %v1948 = vrot.slane %v202, %v1947
        %v1949 = vlaneseq
        %v1950 = vshrl.u32 %v1949, 7
        %v1951 = vsub.s32 2, %v1950
        %v1952 = vrot.slane %v203, %v1951
        %v1956 = vlaneseq
        %v1957 = vshrl.u32 %v1956, 7
        %v1958 = vsub.s32 2, %v1957
        %v1959 = vrot.slane %v1944, %v1958
        %v1960 = vlaneseq
        %v1961 = vshrl.u32 %v1960, 7
        %v1962 = vsub.s32 2, %v1961
        %v1963 = vrot.slane %v1948, %v1962
        %v1964 = vlaneseq
        %v1965 = vshrl.u32 %v1964, 7
        %v1966 = vsub.s32 2, %v1965
        %v1967 = vrot.slane %v1952, %v1966
        %v1968 = vmul.f32 %v1687, %v1959
        %v1969 = vmul.f32 %v1687, %v1963
        %v1970 = vmul.f32 %v1687, %v1967
        %v1971 = vmul.f32 %v1691, %v1959
        %v1972 = vmul.f32 %v1691, %v1963
        %v1973 = vmul.f32 %v1691, %v1967
        %v1974 = vmul.f32 %v1695, %v1959
        %v1975 = vmul.f32 %v1695, %v1963
        %v1976 = vmul.f32 %v1695, %v1967
        %v1977 = vmul.f32 %v1699, %v1959
        %v1978 = vmul.f32 %v1699, %v1963
        %v1979 = vmul.f32 %v1699, %v1967
        %v1980 = vmul.f32 %v1703, %v1959
        %v1981 = vmul.f32 %v1703, %v1963
        %v1982 = vmul.f32 %v1703, %v1967
        %v1983 = vmul.f32 %v1707, %v1959
        %v1984 = vmul.f32 %v1707, %v1963
        %v1985 = vmul.f32 %v1707, %v1967
        %v1986 = vmul.f32 %v1711, %v1959
        %v1987 = vmul.f32 %v1711, %v1963
        %v1988 = vmul.f32 %v1711, %v1967
        %v1989 = vmul.f32 %v1715, %v1959
        %v1990 = vmul.f32 %v1715, %v1963
        %v1991 = vmul.f32 %v1715, %v1967
        %v1992 = vmul.f32 %v1719, %v1959
        %v1993 = vmul.f32 %v1719, %v1963
        %v1994 = vmul.f32 %v1719, %v1967
        %v1995 = vmul.f32 %v1723, %v1959
        %v1996 = vmul.f32 %v1723, %v1963
        %v1997 = vmul.f32 %v1723, %v1967
        %v1998 = vmul.f32 %v1727, %v1959
        %v1999 = vmul.f32 %v1727, %v1963
        %v2000 = vmul.f32 %v1727, %v1967
        %v2001 = vmul.f32 %v1731, %v1959
        %v2002 = vmul.f32 %v1731, %v1963
        %v2003 = vmul.f32 %v1731, %v1967
        %v2004 = vmul.f32 %v1735, %v1959
        %v2005 = vmul.f32 %v1735, %v1963
        %v2006 = vmul.f32 %v1735, %v1967
        %v2007 = vmul.f32 %v1739, %v1959
        %v2008 = vmul.f32 %v1739, %v1963
        %v2009 = vmul.f32 %v1739, %v1967
        %v2010 = vmul.f32 %v1743, %v1959
        %v2011 = vmul.f32 %v1743, %v1963
        %v2012 = vmul.f32 %v1743, %v1967
        %v2013 = vmul.f32 %v1747, %v1959
        %v2014 = vmul.f32 %v1747, %v1963
        %v2015 = vmul.f32 %v1747, %v1967
        %v2016 = vmul.f32 %v1751, %v1959
        %v2017 = vmul.f32 %v1751, %v1963
        %v2018 = vmul.f32 %v1751, %v1967
        %v2019 = vmul.f32 %v1755, %v1959
        %v2020 = vmul.f32 %v1755, %v1963
        %v2021 = vmul.f32 %v1755, %v1967
        %v2022 = vmul.f32 %v1759, %v1959
        %v2023 = vmul.f32 %v1759, %v1963
        %v2024 = vmul.f32 %v1759, %v1967
        %v2025 = vmul.f32 %v1763, %v1959
        %v2026 = vmul.f32 %v1763, %v1963
        %v2027 = vmul.f32 %v1763, %v1967
        %v2028 = vmul.f32 %v1767, %v1959
        %v2029 = vmul.f32 %v1767, %v1963
        %v2030 = vmul.f32 %v1767, %v1967
        %v2031 = vmul.f32 %v1771, %v1959
        %v2032 = vmul.f32 %v1771, %v1963
        %v2033 = vmul.f32 %v1771, %v1967
        %v2034 = vmul.f32 %v1775, %v1959
        %v2035 = vmul.f32 %v1775, %v1963
        %v2036 = vmul.f32 %v1775, %v1967
        %v2037 = vmul.f32 %v1779, %v1959
        %v2038 = vmul.f32 %v1779, %v1963
        %v2039 = vmul.f32 %v1779, %v1967
        %v2040 = vmul.f32 %v1783, %v1959
        %v2041 = vmul.f32 %v1783, %v1963
        %v2042 = vmul.f32 %v1783, %v1967
        %v2043 = vmul.f32 %v1787, %v1959
        %v2044 = vmul.f32 %v1787, %v1963
        %v2045 = vmul.f32 %v1787, %v1967
        %v2046 = vmul.f32 %v1791, %v1959
        %v2047 = vmul.f32 %v1791, %v1963
        %v2048 = vmul.f32 %v1791, %v1967
        %v2049 = vmul.f32 %v1795, %v1959
        %v2050 = vmul.f32 %v1795, %v1963
        %v2051 = vmul.f32 %v1795, %v1967
        %v2052 = vmul.f32 %v1799, %v1959
        %v2053 = vmul.f32 %v1799, %v1963
        %v2054 = vmul.f32 %v1799, %v1967
        %v2055 = vmul.f32 %v1803, %v1959
        %v2056 = vmul.f32 %v1803, %v1963
        %v2057 = vmul.f32 %v1803, %v1967
        %v2058 = vmul.f32 %v1807, %v1959
        %v2059 = vmul.f32 %v1807, %v1963
        %v2060 = vmul.f32 %v1807, %v1967
        %v2061 = vmul.f32 %v1811, %v1959
        %v2062 = vmul.f32 %v1811, %v1963
        %v2063 = vmul.f32 %v1811, %v1967
        %v2064 = vmul.f32 %v1815, %v1959
        %v2065 = vmul.f32 %v1815, %v1963
        %v2066 = vmul.f32 %v1815, %v1967
        %v2067 = vmul.f32 %v1819, %v1959
        %v2068 = vmul.f32 %v1819, %v1963
        %v2069 = vmul.f32 %v1819, %v1967
        %v2070 = vmul.f32 %v1823, %v1959
        %v2071 = vmul.f32 %v1823, %v1963
        %v2072 = vmul.f32 %v1823, %v1967
        %v2073 = vmul.f32 %v1827, %v1959
        %v2074 = vmul.f32 %v1827, %v1963
        %v2075 = vmul.f32 %v1827, %v1967
        %v2076 = vmul.f32 %v1831, %v1959
        %v2077 = vmul.f32 %v1831, %v1963
        %v2078 = vmul.f32 %v1831, %v1967
        %v2079 = vmul.f32 %v1835, %v1959
        %v2080 = vmul.f32 %v1835, %v1963
        %v2081 = vmul.f32 %v1835, %v1967
        %v2082 = vmul.f32 %v1839, %v1959
        %v2083 = vmul.f32 %v1839, %v1963
        %v2084 = vmul.f32 %v1839, %v1967
        %v2085 = vmul.f32 %v1843, %v1959
        %v2086 = vmul.f32 %v1843, %v1963
        %v2087 = vmul.f32 %v1843, %v1967
        %v2088 = vmul.f32 %v1847, %v1959
        %v2089 = vmul.f32 %v1847, %v1963
        %v2090 = vmul.f32 %v1847, %v1967
        %v2091 = vmul.f32 %v1851, %v1959
        %v2092 = vmul.f32 %v1851, %v1963
        %v2093 = vmul.f32 %v1851, %v1967
        %v2094 = vmul.f32 %v1855, %v1959
        %v2095 = vmul.f32 %v1855, %v1963
        %v2096 = vmul.f32 %v1855, %v1967
        %v2097 = vmul.f32 %v1859, %v1959
        %v2098 = vmul.f32 %v1859, %v1963
        %v2099 = vmul.f32 %v1859, %v1967
        %v2100 = vmul.f32 %v1863, %v1959
        %v2101 = vmul.f32 %v1863, %v1963
        %v2102 = vmul.f32 %v1863, %v1967
        %v2103 = vmul.f32 %v1867, %v1959
        %v2104 = vmul.f32 %v1867, %v1963
        %v2105 = vmul.f32 %v1867, %v1967
        %v2106 = vmul.f32 %v1871, %v1959
        %v2107 = vmul.f32 %v1871, %v1963
        %v2108 = vmul.f32 %v1871, %v1967
        %v2109 = vmul.f32 %v1875, %v1959
        %v2110 = vmul.f32 %v1875, %v1963
        %v2111 = vmul.f32 %v1875, %v1967
        %v2112 = vmul.f32 %v1879, %v1959
        %v2113 = vmul.f32 %v1879, %v1963
        %v2114 = vmul.f32 %v1879, %v1967
        %v2115 = vmul.f32 %v1883, %v1959
        %v2116 = vmul.f32 %v1883, %v1963
        %v2117 = vmul.f32 %v1883, %v1967
        %v2118 = vmul.f32 %v1887, %v1959
        %v2119 = vmul.f32 %v1887, %v1963
        %v2120 = vmul.f32 %v1887, %v1967
        %v2121 = vmul.f32 %v1891, %v1959
        %v2122 = vmul.f32 %v1891, %v1963
        %v2123 = vmul.f32 %v1891, %v1967
        %v2124 = vmul.f32 %v1895, %v1959
        %v2125 = vmul.f32 %v1895, %v1963
        %v2126 = vmul.f32 %v1895, %v1967
        %v2127 = vmul.f32 %v1899, %v1959
        %v2128 = vmul.f32 %v1899, %v1963
        %v2129 = vmul.f32 %v1899, %v1967
        %v2130 = vmul.f32 %v1903, %v1959
        %v2131 = vmul.f32 %v1903, %v1963
        %v2132 = vmul.f32 %v1903, %v1967
        %v2133 = vmul.f32 %v1907, %v1959
        %v2134 = vmul.f32 %v1907, %v1963
        %v2135 = vmul.f32 %v1907, %v1967
        %v2136 = vmul.f32 %v1911, %v1959
        %v2137 = vmul.f32 %v1911, %v1963
        %v2138 = vmul.f32 %v1911, %v1967
        %v2139 = vmul.f32 %v1915, %v1959
        %v2140 = vmul.f32 %v1915, %v1963
        %v2141 = vmul.f32 %v1915, %v1967
        %v2142 = vmul.f32 %v1919, %v1959
        %v2143 = vmul.f32 %v1919, %v1963
        %v2144 = vmul.f32 %v1919, %v1967
        %v2145 = vmul.f32 %v1923, %v1959
        %v2146 = vmul.f32 %v1923, %v1963
        %v2147 = vmul.f32 %v1923, %v1967
        %v2148 = vmul.f32 %v1927, %v1959
        %v2149 = vmul.f32 %v1927, %v1963
        %v2150 = vmul.f32 %v1927, %v1967
        %v2151 = vmul.f32 %v1931, %v1959
        %v2152 = vmul.f32 %v1931, %v1963
        %v2153 = vmul.f32 %v1931, %v1967
        %v2154 = vmul.f32 %v1935, %v1959
        %v2155 = vmul.f32 %v1935, %v1963
        %v2156 = vmul.f32 %v1935, %v1967
        %v2157 = vmul.f32 %v1939, %v1959
        %v2158 = vmul.f32 %v1939, %v1963
        %v2159 = vmul.f32 %v1939, %v1967
        %v2160 = vadd.f32 %v1493, %v1968
        %v2161 = vadd.f32 %v1494, %v1969
        %v2162 = vadd.f32 %v1495, %v1970
        %v2163 = vadd.f32 %v1496, %v1971
        %v2164 = vadd.f32 %v1497, %v1972
        %v2165 = vadd.f32 %v1498, %v1973
        %v2166 = vadd.f32 %v1499, %v1974
        %v2167 = vadd.f32 %v1500, %v1975
        %v2168 = vadd.f32 %v1501, %v1976
        %v2169 = vadd.f32 %v1502, %v1977
        %v2170 = vadd.f32 %v1503, %v1978
        %v2171 = vadd.f32 %v1504, %v1979
        %v2172 = vadd.f32 %v1505, %v1980
        %v2173 = vadd.f32 %v1506, %v1981
        %v2174 = vadd.f32 %v1507, %v1982
        %v2175 = vadd.f32 %v1508, %v1983
        %v2176 = vadd.f32 %v1509, %v1984
        %v2177 = vadd.f32 %v1510, %v1985
        %v2178 = vadd.f32 %v1511, %v1986
        %v2179 = vadd.f32 %v1512, %v1987
        %v2180 = vadd.f32 %v1513, %v1988
        %v2181 = vadd.f32 %v1514, %v1989
        %v2182 = vadd.f32 %v1515, %v1990
        %v2183 = vadd.f32 %v1516, %v1991
        %v2184 = vadd.f32 %v1517, %v1992
        %v2185 = vadd.f32 %v1518, %v1993
        %v2186 = vadd.f32 %v1519, %v1994
        %v2187 = vadd.f32 %v1520, %v1995
        %v2188 = vadd.f32 %v1521, %v1996
        %v2189 = vadd.f32 %v1522, %v1997
        %v2190 = vadd.f32 %v1523, %v1998
        %v2191 = vadd.f32 %v1524, %v1999
        %v2192 = vadd.f32 %v1525, %v2000
        %v2193 = vadd.f32 %v1526, %v2001
        %v2194 = vadd.f32 %v1527, %v2002
        %v2195 = vadd.f32 %v1528, %v2003
        %v2196 = vadd.f32 %v1529, %v2004
        %v2197 = vadd.f32 %v1530, %v2005
        %v2198 = vadd.f32 %v1531, %v2006
        %v2199 = vadd.f32 %v1532, %v2007
        %v2200 = vadd.f32 %v1533, %v2008
        %v2201 = vadd.f32 %v1534, %v2009
        %v2202 = vadd.f32 %v1535, %v2010
        %v2203 = vadd.f32 %v1536, %v2011
        %v2204 = vadd.f32 %v1537, %v2012
        %v2205 = vadd.f32 %v1538, %v2013
        %v2206 = vadd.f32 %v1539, %v2014
        %v2207 = vadd.f32 %v1540, %v2015
        %v2208 = vadd.f32 %v1541, %v2016
        %v2209 = vadd.f32 %v1542, %v2017
        %v2210 = vadd.f32 %v1543, %v2018
        %v2211 = vadd.f32 %v1544, %v2019
        %v2212 = vadd.f32 %v1545, %v2020
        %v2213 = vadd.f32 %v1546, %v2021
        %v2214 = vadd.f32 %v1547, %v2022
        %v2215 = vadd.f32 %v1548, %v2023
        %v2216 = vadd.f32 %v1549, %v2024
        %v2217 = vadd.f32 %v1550, %v2025
        %v2218 = vadd.f32 %v1551, %v2026
        %v2219 = vadd.f32 %v1552, %v2027
        %v2220 = vadd.f32 %v1553, %v2028
        %v2221 = vadd.f32 %v1554, %v2029
        %v2222 = vadd.f32 %v1555, %v2030
        %v2223 = vadd.f32 %v1556, %v2031
        %v2224 = vadd.f32 %v1557, %v2032
        %v2225 = vadd.f32 %v1558, %v2033
        %v2226 = vadd.f32 %v1559, %v2034
        %v2227 = vadd.f32 %v1560, %v2035
        %v2228 = vadd.f32 %v1561, %v2036
        %v2229 = vadd.f32 %v1562, %v2037
        %v2230 = vadd.f32 %v1563, %v2038
        %v2231 = vadd.f32 %v1564, %v2039
        %v2232 = vadd.f32 %v1565, %v2040
        %v2233 = vadd.f32 %v1566, %v2041
        %v2234 = vadd.f32 %v1567, %v2042
        %v2235 = vadd.f32 %v1568, %v2043
        %v2236 = vadd.f32 %v1569, %v2044
        %v2237 = vadd.f32 %v1570, %v2045
        %v2238 = vadd.f32 %v1571, %v2046
        %v2239 = vadd.f32 %v1572, %v2047
        %v2240 = vadd.f32 %v1573, %v2048
        %v2241 = vadd.f32 %v1574, %v2049
        %v2242 = vadd.f32 %v1575, %v2050
        %v2243 = vadd.f32 %v1576, %v2051
        %v2244 = vadd.f32 %v1577, %v2052
        %v2245 = vadd.f32 %v1578, %v2053
        %v2246 = vadd.f32 %v1579, %v2054
        %v2247 = vadd.f32 %v1580, %v2055
        %v2248 = vadd.f32 %v1581, %v2056
        %v2249 = vadd.f32 %v1582, %v2057
        %v2250 = vadd.f32 %v1583, %v2058
        %v2251 = vadd.f32 %v1584, %v2059
        %v2252 = vadd.f32 %v1585, %v2060
        %v2253 = vadd.f32 %v1586, %v2061
        %v2254 = vadd.f32 %v1587, %v2062
        %v2255 = vadd.f32 %v1588, %v2063
        %v2256 = vadd.f32 %v1589, %v2064
        %v2257 = vadd.f32 %v1590, %v2065
        %v2258 = vadd.f32 %v1591, %v2066
        %v2259 = vadd.f32 %v1592, %v2067
        %v2260 = vadd.f32 %v1593, %v2068
        %v2261 = vadd.f32 %v1594, %v2069
        %v2262 = vadd.f32 %v1595, %v2070
        %v2263 = vadd.f32 %v1596, %v2071
        %v2264 = vadd.f32 %v1597, %v2072
        %v2265 = vadd.f32 %v1598, %v2073
        %v2266 = vadd.f32 %v1599, %v2074
        %v2267 = vadd.f32 %v1600, %v2075
        %v2268 = vadd.f32 %v1601, %v2076
        %v2269 = vadd.f32 %v1602, %v2077
        %v2270 = vadd.f32 %v1603, %v2078
        %v2271 = vadd.f32 %v1604, %v2079
        %v2272 = vadd.f32 %v1605, %v2080
        %v2273 = vadd.f32 %v1606, %v2081
        %v2274 = vadd.f32 %v1607, %v2082
        %v2275 = vadd.f32 %v1608, %v2083
        %v2276 = vadd.f32 %v1609, %v2084
        %v2277 = vadd.f32 %v1610, %v2085
        %v2278 = vadd.f32 %v1611, %v2086
        %v2279 = vadd.f32 %v1612, %v2087
        %v2280 = vadd.f32 %v1613, %v2088
        %v2281 = vadd.f32 %v1614, %v2089
        %v2282 = vadd.f32 %v1615, %v2090
        %v2283 = vadd.f32 %v1616, %v2091
        %v2284 = vadd.f32 %v1617, %v2092
        %v2285 = vadd.f32 %v1618, %v2093
        %v2286 = vadd.f32 %v1619, %v2094
        %v2287 = vadd.f32 %v1620, %v2095
        %v2288 = vadd.f32 %v1621, %v2096
        %v2289 = vadd.f32 %v1622, %v2097
        %v2290 = vadd.f32 %v1623, %v2098
        %v2291 = vadd.f32 %v1624, %v2099
        %v2292 = vadd.f32 %v1625, %v2100
        %v2293 = vadd.f32 %v1626, %v2101
        %v2294 = vadd.f32 %v1627, %v2102
        %v2295 = vadd.f32 %v1628, %v2103
        %v2296 = vadd.f32 %v1629, %v2104
        %v2297 = vadd.f32 %v1630, %v2105
        %v2298 = vadd.f32 %v1631, %v2106
        %v2299 = vadd.f32 %v1632, %v2107
        %v2300 = vadd.f32 %v1633, %v2108
        %v2301 = vadd.f32 %v1634, %v2109
        %v2302 = vadd.f32 %v1635, %v2110
        %v2303 = vadd.f32 %v1636, %v2111
        %v2304 = vadd.f32 %v1637, %v2112
        %v2305 = vadd.f32 %v1638, %v2113
        %v2306 = vadd.f32 %v1639, %v2114
        %v2307 = vadd.f32 %v1640, %v2115
        %v2308 = vadd.f32 %v1641, %v2116
        %v2309 = vadd.f32 %v1642, %v2117
        %v2310 = vadd.f32 %v1643, %v2118
        %v2311 = vadd.f32 %v1644, %v2119
        %v2312 = vadd.f32 %v1645, %v2120
        %v2313 = vadd.f32 %v1646, %v2121
        %v2314 = vadd.f32 %v1647, %v2122
        %v2315 = vadd.f32 %v1648, %v2123
        %v2316 = vadd.f32 %v1649, %v2124
        %v2317 = vadd.f32 %v1650, %v2125
        %v2318 = vadd.f32 %v1651, %v2126
        %v2319 = vadd.f32 %v1652, %v2127
        %v2320 = vadd.f32 %v1653, %v2128
        %v2321 = vadd.f32 %v1654, %v2129
        %v2322 = vadd.f32 %v1655, %v2130
        %v2323 = vadd.f32 %v1656, %v2131
        %v2324 = vadd.f32 %v1657, %v2132
        %v2325 = vadd.f32 %v1658, %v2133
        %v2326 = vadd.f32 %v1659, %v2134
        %v2327 = vadd.f32 %v1660, %v2135
        %v2328 = vadd.f32 %v1661, %v2136
        %v2329 = vadd.f32 %v1662, %v2137
        %v2330 = vadd.f32 %v1663, %v2138
        %v2331 = vadd.f32 %v1664, %v2139
        %v2332 = vadd.f32 %v1665, %v2140
        %v2333 = vadd.f32 %v1666, %v2141
        %v2334 = vadd.f32 %v1667, %v2142
        %v2335 = vadd.f32 %v1668, %v2143
        %v2336 = vadd.f32 %v1669, %v2144
        %v2337 = vadd.f32 %v1670, %v2145
        %v2338 = vadd.f32 %v1671, %v2146
        %v2339 = vadd.f32 %v1672, %v2147
        %v2340 = vadd.f32 %v1673, %v2148
        %v2341 = vadd.f32 %v1674, %v2149
        %v2342 = vadd.f32 %v1675, %v2150
        %v2343 = vadd.f32 %v1676, %v2151
        %v2344 = vadd.f32 %v1677, %v2152
        %v2345 = vadd.f32 %v1678, %v2153
        %v2346 = vadd.f32 %v1679, %v2154
        %v2347 = vadd.f32 %v1680, %v2155
        %v2348 = vadd.f32 %v1681, %v2156
        %v2349 = vadd.f32 %v1682, %v2157
        %v2350 = vadd.f32 %v1683, %v2158
        %v2351 = vadd.f32 %v1684, %v2159
        %v2352 = vlaneseq
        %v2353 = vand.u32 %v2352, 127
        %v2354 = vadd.s32 %v2353, 128
        %v2355 = vadd.s32 %v2353, 256
        %vm2356 = vcmp.ge.s32.totalorder %v2353, 0
        %vm2357 = vcmp.ge.s32.totalorder %v2354, 0
        %vm2358 = vcmp.ge.s32.totalorder %v2355, 0
        %vm2359 = vcmp.lt.s32.totalorder %v2353, 256
        %vm2360 = vcmp.lt.s32.totalorder %v2354, 256
        %vm2361 = vcmp.lt.s32.totalorder %v2355, 256
        %vm2362 = vmand %vm2356, %vm2359
        %vm2363 = vmand %vm2357, %vm2360
        %vm2364 = vmand %vm2358, %vm2361
        %v2365 = vmax.f32 %v2160, 0.0
        %v2366 = vmax.f32 %v2161, 0.0
        %v2367 = vmax.f32 %v2162, 0.0
        %v2368 = vmax.f32 %v2163, 0.0
        %v2369 = vmax.f32 %v2164, 0.0
        %v2370 = vmax.f32 %v2165, 0.0
        %v2371 = vmax.f32 %v2166, 0.0
        %v2372 = vmax.f32 %v2167, 0.0
        %v2373 = vmax.f32 %v2168, 0.0
        %v2374 = vmax.f32 %v2169, 0.0
        %v2375 = vmax.f32 %v2170, 0.0
        %v2376 = vmax.f32 %v2171, 0.0
        %v2377 = vmax.f32 %v2172, 0.0
        %v2378 = vmax.f32 %v2173, 0.0
        %v2379 = vmax.f32 %v2174, 0.0
        %v2380 = vmax.f32 %v2175, 0.0
        %v2381 = vmax.f32 %v2176, 0.0
        %v2382 = vmax.f32 %v2177, 0.0
        %v2383 = vmax.f32 %v2178, 0.0
        %v2384 = vmax.f32 %v2179, 0.0
        %v2385 = vmax.f32 %v2180, 0.0
        %v2386 = vmax.f32 %v2181, 0.0
        %v2387 = vmax.f32 %v2182, 0.0
        %v2388 = vmax.f32 %v2183, 0.0
        %v2389 = vmax.f32 %v2184, 0.0
        %v2390 = vmax.f32 %v2185, 0.0
        %v2391 = vmax.f32 %v2186, 0.0
        %v2392 = vmax.f32 %v2187, 0.0
        %v2393 = vmax.f32 %v2188, 0.0
        %v2394 = vmax.f32 %v2189, 0.0
        %v2395 = vmax.f32 %v2190, 0.0
        %v2396 = vmax.f32 %v2191, 0.0
        %v2397 = vmax.f32 %v2192, 0.0
        %v2398 = vmax.f32 %v2193, 0.0
        %v2399 = vmax.f32 %v2194, 0.0
        %v2400 = vmax.f32 %v2195, 0.0
        %v2401 = vmax.f32 %v2196, 0.0
        %v2402 = vmax.f32 %v2197, 0.0
        %v2403 = vmax.f32 %v2198, 0.0
        %v2404 = vmax.f32 %v2199, 0.0
        %v2405 = vmax.f32 %v2200, 0.0
        %v2406 = vmax.f32 %v2201, 0.0
        %v2407 = vmax.f32 %v2202, 0.0
        %v2408 = vmax.f32 %v2203, 0.0
        %v2409 = vmax.f32 %v2204, 0.0
        %v2410 = vmax.f32 %v2205, 0.0
        %v2411 = vmax.f32 %v2206, 0.0
        %v2412 = vmax.f32 %v2207, 0.0
        %v2413 = vmax.f32 %v2208, 0.0
        %v2414 = vmax.f32 %v2209, 0.0
        %v2415 = vmax.f32 %v2210, 0.0
        %v2416 = vmax.f32 %v2211, 0.0
        %v2417 = vmax.f32 %v2212, 0.0
        %v2418 = vmax.f32 %v2213, 0.0
        %v2419 = vmax.f32 %v2214, 0.0
        %v2420 = vmax.f32 %v2215, 0.0
        %v2421 = vmax.f32 %v2216, 0.0
        %v2422 = vmax.f32 %v2217, 0.0
        %v2423 = vmax.f32 %v2218, 0.0
        %v2424 = vmax.f32 %v2219, 0.0
        %v2425 = vmax.f32 %v2220, 0.0
        %v2426 = vmax.f32 %v2221, 0.0
        %v2427 = vmax.f32 %v2222, 0.0
        %v2428 = vmax.f32 %v2223, 0.0
        %v2429 = vmax.f32 %v2224, 0.0
        %v2430 = vmax.f32 %v2225, 0.0
        %v2431 = vmax.f32 %v2226, 0.0
        %v2432 = vmax.f32 %v2227, 0.0
        %v2433 = vmax.f32 %v2228, 0.0
        %v2434 = vmax.f32 %v2229, 0.0
        %v2435 = vmax.f32 %v2230, 0.0
        %v2436 = vmax.f32 %v2231, 0.0
        %v2437 = vmax.f32 %v2232, 0.0
        %v2438 = vmax.f32 %v2233, 0.0
        %v2439 = vmax.f32 %v2234, 0.0
        %v2440 = vmax.f32 %v2235, 0.0
        %v2441 = vmax.f32 %v2236, 0.0
        %v2442 = vmax.f32 %v2237, 0.0
        %v2443 = vmax.f32 %v2238, 0.0
        %v2444 = vmax.f32 %v2239, 0.0
        %v2445 = vmax.f32 %v2240, 0.0
        %v2446 = vmax.f32 %v2241, 0.0
        %v2447 = vmax.f32 %v2242, 0.0
        %v2448 = vmax.f32 %v2243, 0.0
        %v2449 = vmax.f32 %v2244, 0.0
        %v2450 = vmax.f32 %v2245, 0.0
        %v2451 = vmax.f32 %v2246, 0.0
        %v2452 = vmax.f32 %v2247, 0.0
        %v2453 = vmax.f32 %v2248, 0.0
        %v2454 = vmax.f32 %v2249, 0.0
        %v2455 = vmax.f32 %v2250, 0.0
        %v2456 = vmax.f32 %v2251, 0.0
        %v2457 = vmax.f32 %v2252, 0.0
        %v2458 = vmax.f32 %v2253, 0.0
        %v2459 = vmax.f32 %v2254, 0.0
        %v2460 = vmax.f32 %v2255, 0.0
        %v2461 = vmax.f32 %v2256, 0.0
        %v2462 = vmax.f32 %v2257, 0.0
        %v2463 = vmax.f32 %v2258, 0.0
        %v2464 = vmax.f32 %v2259, 0.0
        %v2465 = vmax.f32 %v2260, 0.0
        %v2466 = vmax.f32 %v2261, 0.0
        %v2467 = vmax.f32 %v2262, 0.0
        %v2468 = vmax.f32 %v2263, 0.0
        %v2469 = vmax.f32 %v2264, 0.0
        %v2470 = vmax.f32 %v2265, 0.0
        %v2471 = vmax.f32 %v2266, 0.0
        %v2472 = vmax.f32 %v2267, 0.0
        %v2473 = vmax.f32 %v2268, 0.0
        %v2474 = vmax.f32 %v2269, 0.0
        %v2475 = vmax.f32 %v2270, 0.0
        %v2476 = vmax.f32 %v2271, 0.0
        %v2477 = vmax.f32 %v2272, 0.0
        %v2478 = vmax.f32 %v2273, 0.0
        %v2479 = vmax.f32 %v2274, 0.0
        %v2480 = vmax.f32 %v2275, 0.0
        %v2481 = vmax.f32 %v2276, 0.0
        %v2482 = vmax.f32 %v2277, 0.0
        %v2483 = vmax.f32 %v2278, 0.0
        %v2484 = vmax.f32 %v2279, 0.0
        %v2485 = vmax.f32 %v2280, 0.0
        %v2486 = vmax.f32 %v2281, 0.0
        %v2487 = vmax.f32 %v2282, 0.0
        %v2488 = vmax.f32 %v2283, 0.0
        %v2489 = vmax.f32 %v2284, 0.0
        %v2490 = vmax.f32 %v2285, 0.0
        %v2491 = vmax.f32 %v2286, 0.0
        %v2492 = vmax.f32 %v2287, 0.0
        %v2493 = vmax.f32 %v2288, 0.0
        %v2494 = vmax.f32 %v2289, 0.0
        %v2495 = vmax.f32 %v2290, 0.0
        %v2496 = vmax.f32 %v2291, 0.0
        %v2497 = vmax.f32 %v2292, 0.0
        %v2498 = vmax.f32 %v2293, 0.0
        %v2499 = vmax.f32 %v2294, 0.0
        %v2500 = vmax.f32 %v2295, 0.0
        %v2501 = vmax.f32 %v2296, 0.0
        %v2502 = vmax.f32 %v2297, 0.0
        %v2503 = vmax.f32 %v2298, 0.0
        %v2504 = vmax.f32 %v2299, 0.0
        %v2505 = vmax.f32 %v2300, 0.0
        %v2506 = vmax.f32 %v2301, 0.0
        %v2507 = vmax.f32 %v2302, 0.0
        %v2508 = vmax.f32 %v2303, 0.0
        %v2509 = vmax.f32 %v2304, 0.0
        %v2510 = vmax.f32 %v2305, 0.0
        %v2511 = vmax.f32 %v2306, 0.0
        %v2512 = vmax.f32 %v2307, 0.0
        %v2513 = vmax.f32 %v2308, 0.0
        %v2514 = vmax.f32 %v2309, 0.0
        %v2515 = vmax.f32 %v2310, 0.0
        %v2516 = vmax.f32 %v2311, 0.0
        %v2517 = vmax.f32 %v2312, 0.0
        %v2518 = vmax.f32 %v2313, 0.0
        %v2519 = vmax.f32 %v2314, 0.0
        %v2520 = vmax.f32 %v2315, 0.0
        %v2521 = vmax.f32 %v2316, 0.0
        %v2522 = vmax.f32 %v2317, 0.0
        %v2523 = vmax.f32 %v2318, 0.0
        %v2524 = vmax.f32 %v2319, 0.0
        %v2525 = vmax.f32 %v2320, 0.0
        %v2526 = vmax.f32 %v2321, 0.0
        %v2527 = vmax.f32 %v2322, 0.0
        %v2528 = vmax.f32 %v2323, 0.0
        %v2529 = vmax.f32 %v2324, 0.0
        %v2530 = vmax.f32 %v2325, 0.0
        %v2531 = vmax.f32 %v2326, 0.0
        %v2532 = vmax.f32 %v2327, 0.0
        %v2533 = vmax.f32 %v2328, 0.0
        %v2534 = vmax.f32 %v2329, 0.0
        %v2535 = vmax.f32 %v2330, 0.0
        %v2536 = vmax.f32 %v2331, 0.0
        %v2537 = vmax.f32 %v2332, 0.0
        %v2538 = vmax.f32 %v2333, 0.0
        %v2539 = vmax.f32 %v2334, 0.0
        %v2540 = vmax.f32 %v2335, 0.0
        %v2541 = vmax.f32 %v2336, 0.0
        %v2542 = vmax.f32 %v2337, 0.0
        %v2543 = vmax.f32 %v2338, 0.0
        %v2544 = vmax.f32 %v2339, 0.0
        %v2545 = vmax.f32 %v2340, 0.0
        %v2546 = vmax.f32 %v2341, 0.0
        %v2547 = vmax.f32 %v2342, 0.0
        %v2548 = vmax.f32 %v2343, 0.0
        %v2549 = vmax.f32 %v2344, 0.0
        %v2550 = vmax.f32 %v2345, 0.0
        %v2551 = vmax.f32 %v2346, 0.0
        %v2552 = vmax.f32 %v2347, 0.0
        %v2553 = vmax.f32 %v2348, 0.0
        %v2554 = vmax.f32 %v2349, 0.0
        %v2555 = vmax.f32 %v2350, 0.0
        %v2556 = vmax.f32 %v2351, 0.0
        %v2557 = vsel %vm2362, %v2365, %v2160
        %v2558 = vsel %vm2363, %v2366, %v2161
        %v2559 = vsel %vm2364, %v2367, %v2162
        %v2560 = vsel %vm2362, %v2368, %v2163
        %v2561 = vsel %vm2363, %v2369, %v2164
        %v2562 = vsel %vm2364, %v2370, %v2165
        %v2563 = vsel %vm2362, %v2371, %v2166
        %v2564 = vsel %vm2363, %v2372, %v2167
        %v2565 = vsel %vm2364, %v2373, %v2168
        %v2566 = vsel %vm2362, %v2374, %v2169
        %v2567 = vsel %vm2363, %v2375, %v2170
        %v2568 = vsel %vm2364, %v2376, %v2171
        %v2569 = vsel %vm2362, %v2377, %v2172
        %v2570 = vsel %vm2363, %v2378, %v2173
        %v2571 = vsel %vm2364, %v2379, %v2174
        %v2572 = vsel %vm2362, %v2380, %v2175
        %v2573 = vsel %vm2363, %v2381, %v2176
        %v2574 = vsel %vm2364, %v2382, %v2177
        %v2575 = vsel %vm2362, %v2383, %v2178
        %v2576 = vsel %vm2363, %v2384, %v2179
        %v2577 = vsel %vm2364, %v2385, %v2180
        %v2578 = vsel %vm2362, %v2386, %v2181
        %v2579 = vsel %vm2363, %v2387, %v2182
        %v2580 = vsel %vm2364, %v2388, %v2183
        %v2581 = vsel %vm2362, %v2389, %v2184
        %v2582 = vsel %vm2363, %v2390, %v2185
        %v2583 = vsel %vm2364, %v2391, %v2186
        %v2584 = vsel %vm2362, %v2392, %v2187
        %v2585 = vsel %vm2363, %v2393, %v2188
        %v2586 = vsel %vm2364, %v2394, %v2189
        %v2587 = vsel %vm2362, %v2395, %v2190
        %v2588 = vsel %vm2363, %v2396, %v2191
        %v2589 = vsel %vm2364, %v2397, %v2192
        %v2590 = vsel %vm2362, %v2398, %v2193
        %v2591 = vsel %vm2363, %v2399, %v2194
        %v2592 = vsel %vm2364, %v2400, %v2195
        %v2593 = vsel %vm2362, %v2401, %v2196
        %v2594 = vsel %vm2363, %v2402, %v2197
        %v2595 = vsel %vm2364, %v2403, %v2198
        %v2596 = vsel %vm2362, %v2404, %v2199
        %v2597 = vsel %vm2363, %v2405, %v2200
        %v2598 = vsel %vm2364, %v2406, %v2201
        %v2599 = vsel %vm2362, %v2407, %v2202
        %v2600 = vsel %vm2363, %v2408, %v2203
        %v2601 = vsel %vm2364, %v2409, %v2204
        %v2602 = vsel %vm2362, %v2410, %v2205
        %v2603 = vsel %vm2363, %v2411, %v2206
        %v2604 = vsel %vm2364, %v2412, %v2207
        %v2605 = vsel %vm2362, %v2413, %v2208
        %v2606 = vsel %vm2363, %v2414, %v2209
        %v2607 = vsel %vm2364, %v2415, %v2210
        %v2608 = vsel %vm2362, %v2416, %v2211
        %v2609 = vsel %vm2363, %v2417, %v2212
        %v2610 = vsel %vm2364, %v2418, %v2213
        %v2611 = vsel %vm2362, %v2419, %v2214
        %v2612 = vsel %vm2363, %v2420, %v2215
        %v2613 = vsel %vm2364, %v2421, %v2216
        %v2614 = vsel %vm2362, %v2422, %v2217
        %v2615 = vsel %vm2363, %v2423, %v2218
        %v2616 = vsel %vm2364, %v2424, %v2219
        %v2617 = vsel %vm2362, %v2425, %v2220
        %v2618 = vsel %vm2363, %v2426, %v2221
        %v2619 = vsel %vm2364, %v2427, %v2222
        %v2620 = vsel %vm2362, %v2428, %v2223
        %v2621 = vsel %vm2363, %v2429, %v2224
        %v2622 = vsel %vm2364, %v2430, %v2225
        %v2623 = vsel %vm2362, %v2431, %v2226
        %v2624 = vsel %vm2363, %v2432, %v2227
        %v2625 = vsel %vm2364, %v2433, %v2228
        %v2626 = vsel %vm2362, %v2434, %v2229
        %v2627 = vsel %vm2363, %v2435, %v2230
        %v2628 = vsel %vm2364, %v2436, %v2231
        %v2629 = vsel %vm2362, %v2437, %v2232
        %v2630 = vsel %vm2363, %v2438, %v2233
        %v2631 = vsel %vm2364, %v2439, %v2234
        %v2632 = vsel %vm2362, %v2440, %v2235
        %v2633 = vsel %vm2363, %v2441, %v2236
        %v2634 = vsel %vm2364, %v2442, %v2237
        %v2635 = vsel %vm2362, %v2443, %v2238
        %v2636 = vsel %vm2363, %v2444, %v2239
        %v2637 = vsel %vm2364, %v2445, %v2240
        %v2638 = vsel %vm2362, %v2446, %v2241
        %v2639 = vsel %vm2363, %v2447, %v2242
        %v2640 = vsel %vm2364, %v2448, %v2243
        %v2641 = vsel %vm2362, %v2449, %v2244
        %v2642 = vsel %vm2363, %v2450, %v2245
        %v2643 = vsel %vm2364, %v2451, %v2246
        %v2644 = vsel %vm2362, %v2452, %v2247
        %v2645 = vsel %vm2363, %v2453, %v2248
        %v2646 = vsel %vm2364, %v2454, %v2249
        %v2647 = vsel %vm2362, %v2455, %v2250
        %v2648 = vsel %vm2363, %v2456, %v2251
        %v2649 = vsel %vm2364, %v2457, %v2252
        %v2650 = vsel %vm2362, %v2458, %v2253
        %v2651 = vsel %vm2363, %v2459, %v2254
        %v2652 = vsel %vm2364, %v2460, %v2255
        %v2653 = vsel %vm2362, %v2461, %v2256
        %v2654 = vsel %vm2363, %v2462, %v2257
        %v2655 = vsel %vm2364, %v2463, %v2258
        %v2656 = vsel %vm2362, %v2464, %v2259
        %v2657 = vsel %vm2363, %v2465, %v2260
        %v2658 = vsel %vm2364, %v2466, %v2261
        %v2659 = vsel %vm2362, %v2467, %v2262
        %v2660 = vsel %vm2363, %v2468, %v2263
        %v2661 = vsel %vm2364, %v2469, %v2264
        %v2662 = vsel %vm2362, %v2470, %v2265
        %v2663 = vsel %vm2363, %v2471, %v2266
        %v2664 = vsel %vm2364, %v2472, %v2267
        %v2665 = vsel %vm2362, %v2473, %v2268
        %v2666 = vsel %vm2363, %v2474, %v2269
        %v2667 = vsel %vm2364, %v2475, %v2270
        %v2668 = vsel %vm2362, %v2476, %v2271
        %v2669 = vsel %vm2363, %v2477, %v2272
        %v2670 = vsel %vm2364, %v2478, %v2273
        %v2671 = vsel %vm2362, %v2479, %v2274
        %v2672 = vsel %vm2363, %v2480, %v2275
        %v2673 = vsel %vm2364, %v2481, %v2276
        %v2674 = vsel %vm2362, %v2482, %v2277
        %v2675 = vsel %vm2363, %v2483, %v2278
        %v2676 = vsel %vm2364, %v2484, %v2279
        %v2677 = vsel %vm2362, %v2485, %v2280
        %v2678 = vsel %vm2363, %v2486, %v2281
        %v2679 = vsel %vm2364, %v2487, %v2282
        %v2680 = vsel %vm2362, %v2488, %v2283
        %v2681 = vsel %vm2363, %v2489, %v2284
        %v2682 = vsel %vm2364, %v2490, %v2285
        %v2683 = vsel %vm2362, %v2491, %v2286
        %v2684 = vsel %vm2363, %v2492, %v2287
        %v2685 = vsel %vm2364, %v2493, %v2288
        %v2686 = vsel %vm2362, %v2494, %v2289
        %v2687 = vsel %vm2363, %v2495, %v2290
        %v2688 = vsel %vm2364, %v2496, %v2291
        %v2689 = vsel %vm2362, %v2497, %v2292
        %v2690 = vsel %vm2363, %v2498, %v2293
        %v2691 = vsel %vm2364, %v2499, %v2294
        %v2692 = vsel %vm2362, %v2500, %v2295
        %v2693 = vsel %vm2363, %v2501, %v2296
        %v2694 = vsel %vm2364, %v2502, %v2297
        %v2695 = vsel %vm2362, %v2503, %v2298
        %v2696 = vsel %vm2363, %v2504, %v2299
        %v2697 = vsel %vm2364, %v2505, %v2300
        %v2698 = vsel %vm2362, %v2506, %v2301
        %v2699 = vsel %vm2363, %v2507, %v2302
        %v2700 = vsel %vm2364, %v2508, %v2303
        %v2701 = vsel %vm2362, %v2509, %v2304
        %v2702 = vsel %vm2363, %v2510, %v2305
        %v2703 = vsel %vm2364, %v2511, %v2306
        %v2704 = vsel %vm2362, %v2512, %v2307
        %v2705 = vsel %vm2363, %v2513, %v2308
        %v2706 = vsel %vm2364, %v2514, %v2309
        %v2707 = vsel %vm2362, %v2515, %v2310
        %v2708 = vsel %vm2363, %v2516, %v2311
        %v2709 = vsel %vm2364, %v2517, %v2312
        %v2710 = vsel %vm2362, %v2518, %v2313
        %v2711 = vsel %vm2363, %v2519, %v2314
        %v2712 = vsel %vm2364, %v2520, %v2315
        %v2713 = vsel %vm2362, %v2521, %v2316
        %v2714 = vsel %vm2363, %v2522, %v2317
        %v2715 = vsel %vm2364, %v2523, %v2318
        %v2716 = vsel %vm2362, %v2524, %v2319
        %v2717 = vsel %vm2363, %v2525, %v2320
        %v2718 = vsel %vm2364, %v2526, %v2321
        %v2719 = vsel %vm2362, %v2527, %v2322
        %v2720 = vsel %vm2363, %v2528, %v2323
        %v2721 = vsel %vm2364, %v2529, %v2324
        %v2722 = vsel %vm2362, %v2530, %v2325
        %v2723 = vsel %vm2363, %v2531, %v2326
        %v2724 = vsel %vm2364, %v2532, %v2327
        %v2725 = vsel %vm2362, %v2533, %v2328
        %v2726 = vsel %vm2363, %v2534, %v2329
        %v2727 = vsel %vm2364, %v2535, %v2330
        %v2728 = vsel %vm2362, %v2536, %v2331
        %v2729 = vsel %vm2363, %v2537, %v2332
        %v2730 = vsel %vm2364, %v2538, %v2333
        %v2731 = vsel %vm2362, %v2539, %v2334
        %v2732 = vsel %vm2363, %v2540, %v2335
        %v2733 = vsel %vm2364, %v2541, %v2336
        %v2734 = vsel %vm2362, %v2542, %v2337
        %v2735 = vsel %vm2363, %v2543, %v2338
        %v2736 = vsel %vm2364, %v2544, %v2339
        %v2737 = vsel %vm2362, %v2545, %v2340
        %v2738 = vsel %vm2363, %v2546, %v2341
        %v2739 = vsel %vm2364, %v2547, %v2342
        %v2740 = vsel %vm2362, %v2548, %v2343
        %v2741 = vsel %vm2363, %v2549, %v2344
        %v2742 = vsel %vm2364, %v2550, %v2345
        %v2743 = vsel %vm2362, %v2551, %v2346
        %v2744 = vsel %vm2363, %v2552, %v2347
        %v2745 = vsel %vm2364, %v2553, %v2348
        %v2746 = vsel %vm2362, %v2554, %v2349
        %v2747 = vsel %vm2363, %v2555, %v2350
        %v2748 = vsel %vm2364, %v2556, %v2351
        %2749 = vst [vmem:[%s200] sm:$0xff] %v2557
        %2750 = vst [vmem:[%s200 + $0x8] sm:$0xff] %v2558
        %vm2751 = vcmask 261120
        %2752 = vst.msk [vmem:[%s200 + $0x10] sm:$0xff] %vm2751, %v2559
        %2753 = vst [vmem:[%s200 + $0x18] sm:$0xff] %v2560
        %2754 = vst [vmem:[%s200 + $0x20] sm:$0xff] %v2561
        %2755 = vst.msk [vmem:[%s200 + $0x28] sm:$0xff] %vm2751, %v2562
        %2756 = vst [vmem:[%s200 + $0x30] sm:$0xff] %v2563
        %2757 = vst [vmem:[%s200 + $0x38] sm:$0xff] %v2564
        %2758 = vst.msk [vmem:[%s200 + $0x40] sm:$0xff] %vm2751, %v2565
        %2759 = vst [vmem:[%s200 + $0x48] sm:$0xff] %v2566
        %2760 = vst [vmem:[%s200 + $0x50] sm:$0xff] %v2567
        %2761 = vst.msk [vmem:[%s200 + $0x58] sm:$0xff] %vm2751, %v2568
        %2762 = vst [vmem:[%s200 + $0x60] sm:$0xff] %v2569
        %2763 = vst [vmem:[%s200 + $0x68] sm:$0xff] %v2570
        %2764 = vst.msk [vmem:[%s200 + $0x70] sm:$0xff] %vm2751, %v2571
        %2765 = vst [vmem:[%s200 + $0x78] sm:$0xff] %v2572
        %2766 = vst [vmem:[%s200 + $0x80] sm:$0xff] %v2573
        %2767 = vst.msk [vmem:[%s200 + $0x88] sm:$0xff] %vm2751, %v2574
        %2768 = vst [vmem:[%s200 + $0x90] sm:$0xff] %v2575
        %2769 = vst [vmem:[%s200 + $0x98] sm:$0xff] %v2576
        %2770 = vst.msk [vmem:[%s200 + $0xa0] sm:$0xff] %vm2751, %v2577
        %2771 = vst [vmem:[%s200 + $0xa8] sm:$0xff] %v2578
        %2772 = vst [vmem:[%s200 + $0xb0] sm:$0xff] %v2579
        %2773 = vst.msk [vmem:[%s200 + $0xb8] sm:$0xff] %vm2751, %v2580
        %2774 = vst [vmem:[%s200 + $0xc0] sm:$0xff] %v2581
        %2775 = vst [vmem:[%s200 + $0xc8] sm:$0xff] %v2582
        %2776 = vst.msk [vmem:[%s200 + $0xd0] sm:$0xff] %vm2751, %v2583
        %2777 = vst [vmem:[%s200 + $0xd8] sm:$0xff] %v2584
        %2778 = vst [vmem:[%s200 + $0xe0] sm:$0xff] %v2585
        %2779 = vst.msk [vmem:[%s200 + $0xe8] sm:$0xff] %vm2751, %v2586
        %2780 = vst [vmem:[%s200 + $0xf0] sm:$0xff] %v2587
        %2781 = vst [vmem:[%s200 + $0xf8] sm:$0xff] %v2588
        %2782 = vst.msk [vmem:[%s200 + $0x100] sm:$0xff] %vm2751, %v2589
        %2783 = vst [vmem:[%s200 + $0x108] sm:$0xff] %v2590
        %2784 = vst [vmem:[%s200 + $0x110] sm:$0xff] %v2591
        %2785 = vst.msk [vmem:[%s200 + $0x118] sm:$0xff] %vm2751, %v2592
        %2786 = vst [vmem:[%s200 + $0x120] sm:$0xff] %v2593
        %2787 = vst [vmem:[%s200 + $0x128] sm:$0xff] %v2594
        %2788 = vst.msk [vmem:[%s200 + $0x130] sm:$0xff] %vm2751, %v2595
        %2789 = vst [vmem:[%s200 + $0x138] sm:$0xff] %v2596
        %2790 = vst [vmem:[%s200 + $0x140] sm:$0xff] %v2597
        %2791 = vst.msk [vmem:[%s200 + $0x148] sm:$0xff] %vm2751, %v2598
        %2792 = vst [vmem:[%s200 + $0x150] sm:$0xff] %v2599
        %2793 = vst [vmem:[%s200 + $0x158] sm:$0xff] %v2600
        %2794 = vst.msk [vmem:[%s200 + $0x160] sm:$0xff] %vm2751, %v2601
        %2795 = vst [vmem:[%s200 + $0x168] sm:$0xff] %v2602
        %2796 = vst [vmem:[%s200 + $0x170] sm:$0xff] %v2603
        %2797 = vst.msk [vmem:[%s200 + $0x178] sm:$0xff] %vm2751, %v2604
        %2798 = vst [vmem:[%s200 + $0x180] sm:$0xff] %v2605
        %2799 = vst [vmem:[%s200 + $0x188] sm:$0xff] %v2606
        %2800 = vst.msk [vmem:[%s200 + $0x190] sm:$0xff] %vm2751, %v2607
        %2801 = vst [vmem:[%s200 + $0x198] sm:$0xff] %v2608
        %2802 = vst [vmem:[%s200 + $0x1a0] sm:$0xff] %v2609
        %2803 = vst.msk [vmem:[%s200 + $0x1a8] sm:$0xff] %vm2751, %v2610
        %2804 = vst [vmem:[%s200 + $0x1b0] sm:$0xff] %v2611
        %2805 = vst [vmem:[%s200 + $0x1b8] sm:$0xff] %v2612
        %2806 = vst.msk [vmem:[%s200 + $0x1c0] sm:$0xff] %vm2751, %v2613
        %2807 = vst [vmem:[%s200 + $0x1c8] sm:$0xff] %v2614
        %2808 = vst [vmem:[%s200 + $0x1d0] sm:$0xff] %v2615
        %2809 = vst.msk [vmem:[%s200 + $0x1d8] sm:$0xff] %vm2751, %v2616
        %2810 = vst [vmem:[%s200 + $0x1e0] sm:$0xff] %v2617
        %2811 = vst [vmem:[%s200 + $0x1e8] sm:$0xff] %v2618
        %2812 = vst.msk [vmem:[%s200 + $0x1f0] sm:$0xff] %vm2751, %v2619
        %2813 = vst [vmem:[%s200 + $0x1f8] sm:$0xff] %v2620
        %2814 = vst [vmem:[%s200 + $0x200] sm:$0xff] %v2621
        %2815 = vst.msk [vmem:[%s200 + $0x208] sm:$0xff] %vm2751, %v2622
        %2816 = vst [vmem:[%s200 + $0x210] sm:$0xff] %v2623
        %2817 = vst [vmem:[%s200 + $0x218] sm:$0xff] %v2624
        %2818 = vst.msk [vmem:[%s200 + $0x220] sm:$0xff] %vm2751, %v2625
        %2819 = vst [vmem:[%s200 + $0x228] sm:$0xff] %v2626
        %2820 = vst [vmem:[%s200 + $0x230] sm:$0xff] %v2627
        %2821 = vst.msk [vmem:[%s200 + $0x238] sm:$0xff] %vm2751, %v2628
        %2822 = vst [vmem:[%s200 + $0x240] sm:$0xff] %v2629
        %2823 = vst [vmem:[%s200 + $0x248] sm:$0xff] %v2630
        %2824 = vst.msk [vmem:[%s200 + $0x250] sm:$0xff] %vm2751, %v2631
        %2825 = vst [vmem:[%s200 + $0x258] sm:$0xff] %v2632
        %2826 = vst [vmem:[%s200 + $0x260] sm:$0xff] %v2633
        %2827 = vst.msk [vmem:[%s200 + $0x268] sm:$0xff] %vm2751, %v2634
        %2828 = vst [vmem:[%s200 + $0x270] sm:$0xff] %v2635
        %2829 = vst [vmem:[%s200 + $0x278] sm:$0xff] %v2636
        %2830 = vst.msk [vmem:[%s200 + $0x280] sm:$0xff] %vm2751, %v2637
        %2831 = vst [vmem:[%s200 + $0x288] sm:$0xff] %v2638
        %2832 = vst [vmem:[%s200 + $0x290] sm:$0xff] %v2639
        %2833 = vst.msk [vmem:[%s200 + $0x298] sm:$0xff] %vm2751, %v2640
        %2834 = vst [vmem:[%s200 + $0x2a0] sm:$0xff] %v2641
        %2835 = vst [vmem:[%s200 + $0x2a8] sm:$0xff] %v2642
        %2836 = vst.msk [vmem:[%s200 + $0x2b0] sm:$0xff] %vm2751, %v2643
        %2837 = vst [vmem:[%s200 + $0x2b8] sm:$0xff] %v2644
        %2838 = vst [vmem:[%s200 + $0x2c0] sm:$0xff] %v2645
        %2839 = vst.msk [vmem:[%s200 + $0x2c8] sm:$0xff] %vm2751, %v2646
        %2840 = vst [vmem:[%s200 + $0x2d0] sm:$0xff] %v2647
        %2841 = vst [vmem:[%s200 + $0x2d8] sm:$0xff] %v2648
        %2842 = vst.msk [vmem:[%s200 + $0x2e0] sm:$0xff] %vm2751, %v2649
        %2843 = vst [vmem:[%s200 + $0x2e8] sm:$0xff] %v2650
        %2844 = vst [vmem:[%s200 + $0x2f0] sm:$0xff] %v2651
        %2845 = vst.msk [vmem:[%s200 + $0x2f8] sm:$0xff] %vm2751, %v2652
        %2846 = vst [vmem:[%s200 + $0x300] sm:$0xff] %v2653
        %2847 = vst [vmem:[%s200 + $0x308] sm:$0xff] %v2654
        %2848 = vst.msk [vmem:[%s200 + $0x310] sm:$0xff] %vm2751, %v2655
        %2849 = vst [vmem:[%s200 + $0x318] sm:$0xff] %v2656
        %2850 = vst [vmem:[%s200 + $0x320] sm:$0xff] %v2657
        %2851 = vst.msk [vmem:[%s200 + $0x328] sm:$0xff] %vm2751, %v2658
        %2852 = vst [vmem:[%s200 + $0x330] sm:$0xff] %v2659
        %2853 = vst [vmem:[%s200 + $0x338] sm:$0xff] %v2660
        %2854 = vst.msk [vmem:[%s200 + $0x340] sm:$0xff] %vm2751, %v2661
        %2855 = vst [vmem:[%s200 + $0x348] sm:$0xff] %v2662
        %2856 = vst [vmem:[%s200 + $0x350] sm:$0xff] %v2663
        %2857 = vst.msk [vmem:[%s200 + $0x358] sm:$0xff] %vm2751, %v2664
        %2858 = vst [vmem:[%s200 + $0x360] sm:$0xff] %v2665
        %2859 = vst [vmem:[%s200 + $0x368] sm:$0xff] %v2666
        %2860 = vst.msk [vmem:[%s200 + $0x370] sm:$0xff] %vm2751, %v2667
        %2861 = vst [vmem:[%s200 + $0x378] sm:$0xff] %v2668
        %2862 = vst [vmem:[%s200 + $0x380] sm:$0xff] %v2669
        %2863 = vst.msk [vmem:[%s200 + $0x388] sm:$0xff] %vm2751, %v2670
        %2864 = vst [vmem:[%s200 + $0x390] sm:$0xff] %v2671
        %2865 = vst [vmem:[%s200 + $0x398] sm:$0xff] %v2672
        %2866 = vst.msk [vmem:[%s200 + $0x3a0] sm:$0xff] %vm2751, %v2673
        %2867 = vst [vmem:[%s200 + $0x3a8] sm:$0xff] %v2674
        %2868 = vst [vmem:[%s200 + $0x3b0] sm:$0xff] %v2675
        %2869 = vst.msk [vmem:[%s200 + $0x3b8] sm:$0xff] %vm2751, %v2676
        %2870 = vst [vmem:[%s200 + $0x3c0] sm:$0xff] %v2677
        %2871 = vst [vmem:[%s200 + $0x3c8] sm:$0xff] %v2678
        %2872 = vst.msk [vmem:[%s200 + $0x3d0] sm:$0xff] %vm2751, %v2679
        %2873 = vst [vmem:[%s200 + $0x3d8] sm:$0xff] %v2680
        %2874 = vst [vmem:[%s200 + $0x3e0] sm:$0xff] %v2681
        %2875 = vst.msk [vmem:[%s200 + $0x3e8] sm:$0xff] %vm2751, %v2682
        %2876 = vst [vmem:[%s200 + $0x3f0] sm:$0xff] %v2683
        %2877 = vst [vmem:[%s200 + $0x3f8] sm:$0xff] %v2684
        %2878 = vst.msk [vmem:[%s200 + $0x400] sm:$0xff] %vm2751, %v2685
        %2879 = vst [vmem:[%s200 + $0x408] sm:$0xff] %v2686
        %2880 = vst [vmem:[%s200 + $0x410] sm:$0xff] %v2687
        %2881 = vst.msk [vmem:[%s200 + $0x418] sm:$0xff] %vm2751, %v2688
        %2882 = vst [vmem:[%s200 + $0x420] sm:$0xff] %v2689
        %2883 = vst [vmem:[%s200 + $0x428] sm:$0xff] %v2690
        %2884 = vst.msk [vmem:[%s200 + $0x430] sm:$0xff] %vm2751, %v2691
        %2885 = vst [vmem:[%s200 + $0x438] sm:$0xff] %v2692
        %2886 = vst [vmem:[%s200 + $0x440] sm:$0xff] %v2693
        %2887 = vst.msk [vmem:[%s200 + $0x448] sm:$0xff] %vm2751, %v2694
        %2888 = vst [vmem:[%s200 + $0x450] sm:$0xff] %v2695
        %2889 = vst [vmem:[%s200 + $0x458] sm:$0xff] %v2696
        %2890 = vst.msk [vmem:[%s200 + $0x460] sm:$0xff] %vm2751, %v2697
        %2891 = vst [vmem:[%s200 + $0x468] sm:$0xff] %v2698
        %2892 = vst [vmem:[%s200 + $0x470] sm:$0xff] %v2699
        %2893 = vst.msk [vmem:[%s200 + $0x478] sm:$0xff] %vm2751, %v2700
        %2894 = vst [vmem:[%s200 + $0x480] sm:$0xff] %v2701
        %2895 = vst [vmem:[%s200 + $0x488] sm:$0xff] %v2702
        %2896 = vst.msk [vmem:[%s200 + $0x490] sm:$0xff] %vm2751, %v2703
        %2897 = vst [vmem:[%s200 + $0x498] sm:$0xff] %v2704
        %2898 = vst [vmem:[%s200 + $0x4a0] sm:$0xff] %v2705
        %2899 = vst.msk [vmem:[%s200 + $0x4a8] sm:$0xff] %vm2751, %v2706
        %2900 = vst [vmem:[%s200 + $0x4b0] sm:$0xff] %v2707
        %2901 = vst [vmem:[%s200 + $0x4b8] sm:$0xff] %v2708
        %2902 = vst.msk [vmem:[%s200 + $0x4c0] sm:$0xff] %vm2751, %v2709
        %2903 = vst [vmem:[%s200 + $0x4c8] sm:$0xff] %v2710
        %2904 = vst [vmem:[%s200 + $0x4d0] sm:$0xff] %v2711
        %2905 = vst.msk [vmem:[%s200 + $0x4d8] sm:$0xff] %vm2751, %v2712
        %2906 = vst [vmem:[%s200 + $0x4e0] sm:$0xff] %v2713
        %2907 = vst [vmem:[%s200 + $0x4e8] sm:$0xff] %v2714
        %2908 = vst.msk [vmem:[%s200 + $0x4f0] sm:$0xff] %vm2751, %v2715
        %2909 = vst [vmem:[%s200 + $0x4f8] sm:$0xff] %v2716
        %2910 = vst [vmem:[%s200 + $0x500] sm:$0xff] %v2717
        %2911 = vst.msk [vmem:[%s200 + $0x508] sm:$0xff] %vm2751, %v2718
        %2912 = vst [vmem:[%s200 + $0x510] sm:$0xff] %v2719
        %2913 = vst [vmem:[%s200 + $0x518] sm:$0xff] %v2720
        %2914 = vst.msk [vmem:[%s200 + $0x520] sm:$0xff] %vm2751, %v2721
        %2915 = vst [vmem:[%s200 + $0x528] sm:$0xff] %v2722
        %2916 = vst [vmem:[%s200 + $0x530] sm:$0xff] %v2723
        %2917 = vst.msk [vmem:[%s200 + $0x538] sm:$0xff] %vm2751, %v2724
        %2918 = vst [vmem:[%s200 + $0x540] sm:$0xff] %v2725
        %2919 = vst [vmem:[%s200 + $0x548] sm:$0xff] %v2726
        %2920 = vst.msk [vmem:[%s200 + $0x550] sm:$0xff] %vm2751, %v2727
        %2921 = vst [vmem:[%s200 + $0x558] sm:$0xff] %v2728
        %2922 = vst [vmem:[%s200 + $0x560] sm:$0xff] %v2729
        %2923 = vst.msk [vmem:[%s200 + $0x568] sm:$0xff] %vm2751, %v2730
        %2924 = vst [vmem:[%s200 + $0x570] sm:$0xff] %v2731
        %2925 = vst [vmem:[%s200 + $0x578] sm:$0xff] %v2732
        %2926 = vst.msk [vmem:[%s200 + $0x580] sm:$0xff] %vm2751, %v2733
        %2927 = vst [vmem:[%s200 + $0x588] sm:$0xff] %v2734
        %2928 = vst [vmem:[%s200 + $0x590] sm:$0xff] %v2735
        %2929 = vst.msk [vmem:[%s200 + $0x598] sm:$0xff] %vm2751, %v2736
        %2930 = vst [vmem:[%s200 + $0x5a0] sm:$0xff] %v2737
        %2931 = vst [vmem:[%s200 + $0x5a8] sm:$0xff] %v2738
        %2932 = vst.msk [vmem:[%s200 + $0x5b0] sm:$0xff] %vm2751, %v2739
        %2933 = vst [vmem:[%s200 + $0x5b8] sm:$0xff] %v2740
        %2934 = vst [vmem:[%s200 + $0x5c0] sm:$0xff] %v2741
        %2935 = vst.msk [vmem:[%s200 + $0x5c8] sm:$0xff] %vm2751, %v2742
        %2936 = vst [vmem:[%s200 + $0x5d0] sm:$0xff] %v2743
        %2937 = vst [vmem:[%s200 + $0x5d8] sm:$0xff] %v2744
        %2938 = vst.msk [vmem:[%s200 + $0x5e0] sm:$0xff] %vm2751, %v2745
        %2939 = vst [vmem:[%s200 + $0x5e8] sm:$0xff] %v2746
        %2940 = vst [vmem:[%s200 + $0x5f0] sm:$0xff] %v2747
        %2941 = vst.msk [vmem:[%s200 + $0x5f8] sm:$0xff] %vm2751, %v2748
        %s2942 = smul.u32 64, %s16
        %p2943 = scmp.lt.s32.totalorder %s2942, 127
        %s2944 = scalar_select %p2943, %s2942, 127
        %s2945 = smul.addr %s2944, 3
        %s2946 = smul.addr %s2945, 8
        %s2947 = scalar_lea.vmem %s3, %s2946
        // Predicated region
        $region41: #{tpu_custom_call.1} parent=31 // pred_check
          %p2948 = pneg %p102
        $region42: #{tpu_custom_call.1} parent=31 // pred_check_branch
          %2950 = sbr.rel (%p2948) target = $region44
        $region43: #{tpu_custom_call.1} parent=31 // pred_region
          %s2951 = smul.u32 64, %s16
        $region44: #{tpu_custom_call.1} parent=31 // pred_fallthru
          _
      $region32: #{tpu_custom_call.1} parent=5 // pred_fallthru
        _
      %p2952 = scmp.le.s32.totalorder 2, %s11
      // Predicated region
      $region45: #{tpu_custom_call.1} parent=5 // pred_check
        %p2953 = pneg %p2952
      $region46: #{tpu_custom_call.1} parent=5 // pred_check_branch
        %2955 = sbr.rel (%p2953) target = $region48
      $region47: #{tpu_custom_call.1} parent=5 // pred_region
        %s2956 = ssub.s32 %s11, 2
        // Predicated region
        $region49: #{tpu_custom_call.1} parent=47 // pred_check
          %p2957 = pneg %p108
        $region50: #{tpu_custom_call.1} parent=47 // pred_check_branch
          %2959 = sbr.rel (%p2957) target = $region52
        $region51: #{tpu_custom_call.1} parent=47 // pred_region
          %s2960 = smul.u32 64, %s17
          %p2961 = scmp.lt.s32.totalorder %s2960, 127
          %s2962 = scalar_select %p2961, %s2960, 127
          %s2963 = smul.addr %s2962, 3
          %s2964 = smul.addr %s2963, 8
          %s2965 = scalar_lea.vmem %s3, %s2964
        $region52: #{tpu_custom_call.1} parent=47 // pred_fallthru
          _
      $region48: #{tpu_custom_call.1} parent=5 // pred_fallthru
        _
    $region6: #{tpu_custom_call.1} parent=1 // loop_footer
      %s15 = sadd.s32 1, %s11
    $region7: #{tpu_custom_call.1} parent=1 // loop_footer_branch
      %10 = sbr.rel target = $region3
    $region8: #{tpu_custom_call.1} parent=1 // loop_exit
      _
    %2966 = vsyncpa [#allocation3], 1
    %s2967 = scalar_lea.sflag [#allocation3], 1
    %2968 = vsyncpa %s2967, 1
    %2969 = vsyncpa [#allocation5], 1

</llo_original>
